<compile_context>
chip_gen: v5e
topology: v5e:2x2
jax: 0.10.0
libtpu: 0.0.40
codegen_flags: <defaults>
</compile_context>

<pallas_src>
import jax
import jax.numpy as jnp
from jax.experimental import pallas as pl
from jax.experimental.pallas import tpu as pltpu

EPS = 1e-5  # PyTorch BatchNorm default eps


# ---------------------------------------------------------------------------
# Fused kernel: (conv + BN1 + Linear1 folded) -> ReLU -> (BN2 + Linear2 folded)
# ---------------------------------------------------------------------------
def head_fused_kernel(x_ref, w1_ref, b1_ref, w2_ref, b2_ref, o_ref):
    # First matmul: folded conv + BN1 + Linear1, bf16 operands, f32 accumulation.
    h = (jnp.dot(x_ref[...], w1_ref[...], preferred_element_type=jnp.float32)
         + b1_ref[...])

    # TODO(synk): Dropout(p=0.75) is identity at inference; training-mode dropout would
    # use pltpu.prng_seed / pltpu.prng_random_bits here.
    h = jnp.maximum(h, 0.0).astype(jnp.bfloat16)  # ReLU

    # Second matmul: BN2 + Linear2 folded; output is lane-padded to a multiple of 128.
    o_ref[...] = (jnp.dot(h, w2_ref[...], preferred_element_type=jnp.float32)
                  + b2_ref[...])


# ---------------------------------------------------------------------------
# Batch-tile picker (v7x dual-TC sharding, MXU-friendly M, VMEM cap)
# ---------------------------------------------------------------------------
def _pick_tb(B, K, Opad):
    if B < 16:
        return B  # single step; block equals full batch dim (layout-legal for any B)
    # >= 2 grid steps so dimension_semantics=("parallel",) can shard across v7x's 2 TCs;
    # multiples of 8 (sublane), capped at 256 rows (MXU M-extent on v6e/v7x).
    half = (B + 1) // 2
    tb = min(256, ((half + 7) // 8) * 8)
    # Keep double-buffered activations (bf16 in + f32 out) under ~8 MiB of VMEM.
    row_bytes = 2 * (K * 2 + Opad * 4)
    cap = max(8, (8 * 1024 * 1024 // row_bytes) // 8 * 8)
    return max(8, min(tb, cap))


# ---------------------------------------------------------------------------
# Wrapper: BN / conv folding, layout plumbing, pallas_call
# ---------------------------------------------------------------------------
def head_forward(x0, x1, x2, params, *, tb=None):
    B, Cin, H, W = x0.shape
    Cout = params["c_w"].shape[0]
    hidden = params["l_w"].shape[0]
    out_f = params["o_w"].shape[0]

    # Conv2d(k=1, stride=4, pad=0) == matmul on the stride-4-subsampled pixels.
    xs = x0[:, :, ::4, ::4]                                   # (B, Cin, Ho, Wo)
    Ho, Wo = xs.shape[2], xs.shape[3]
    P = Ho * Wo
    # Per batch row: pixel-major / channel-minor (p, i) feature order.
    # TODO(synk): if the producer layout is controllable, feed x0 pre-subsampled or
    # channels-last so this strided read + transpose fuses into a contiguous copy.
    xc = jnp.transpose(xs, (0, 2, 3, 1)).reshape(B, P * Cin)

    # Small side inputs, flattened once.
    x12 = jnp.concatenate([x1.reshape(B, -1), x2.reshape(B, -1)], axis=1)
    F12 = x12.shape[1]

    CP = Cout * P                      # conv part of the PyTorch-flattened feature dim
    K = P * Cin + F12                  # contraction width after folding conv into Linear1

    # ---- fold BN1 (inference) + conv bias into Linear1 (all in f32) ----
    a1 = params["bn1_g"] * jax.lax.rsqrt(params["bn1_v"] + EPS)          # (in_f,)
    c1 = params["bn1_b"] - params["bn1_m"] * a1
    w1 = a1[:, None] * params["l_w"].T                                   # (in_f, hidden)
    b1 = params["l_b"] + c1 @ params["l_w"].T                            # (hidden,)
    b1 = b1 + jnp.repeat(params["c_b"], P) @ w1[:CP]                     # conv bias fold

    # ---- fold the 1x1 conv into Linear1: Wfold[(p,i),j] = sum_c wc[c,i]*w1[(c,p),j] ----
    wc = params["c_w"].reshape(Cout, Cin)                                # (Cout, Cin)
    w1c = w1[:CP].reshape(Cout, P, hidden)                               # (c, p, j)
    wfold = jnp.einsum("ci,cpj->pij", wc, w1c).reshape(P * Cin, hidden)  # (p*Cin+i, j)
    w1full = jnp.concatenate([wfold, w1[CP:]], axis=0)                   # (K, hidden)

    # ---- fold BN2 (inference) into Linear2 ----
    a2 = params["bn2_g"] * jax.lax.rsqrt(params["bn2_v"] + EPS)
    c2 = params["bn2_b"] - params["bn2_m"] * a2
    w2 = a2[:, None] * params["o_w"].T                                   # (hidden, out_f)
    b2 = params["o_b"] + c2 @ params["o_w"].T                            # (out_f,)

    # ---- lane-dense output: pad out_f to a multiple of 128 (unmasked vst) ----
    Opad = max(128, pl.cdiv(out_f, 128) * 128)
    w2p = jnp.zeros((hidden, Opad), jnp.float32).at[:, :out_f].set(w2)
    b2p = jnp.zeros((1, Opad), jnp.float32).at[0, :out_f].set(b2)

    # Single fused activation matrix (conv pixels + side features), bf16 for the MXU.
    xin = jnp.concatenate([xc, x12], axis=1).astype(jnp.bfloat16)        # (B, K)

    if tb is None:
        tb = _pick_tb(B, K, Opad)
    tb = min(tb, B)
    grid = (pl.cdiv(B, tb),)
    # TODO(synk): for very large P (big spatial conv inputs) the pinned (K, hidden)
    # weight grows with P; switch to a trailing "arbitrary" K-reduction grid axis with an
    # f32 VMEM accumulator instead of pinning the whole weight.

    out = pl.pallas_call(
        head_fused_kernel,
        out_shape=jax.ShapeDtypeStruct((B, Opad), jnp.float32),
        grid=grid,
        in_specs=[
            pl.BlockSpec((tb, K), lambda i: (i, 0)),          # fused activations
            pl.BlockSpec((K, hidden), lambda i: (0, 0)),      # conv+BN1+Linear1 (pinned)
            pl.BlockSpec((1, hidden), lambda i: (0, 0)),      # folded bias 1
            pl.BlockSpec((hidden, Opad), lambda i: (0, 0)),   # BN2+Linear2 (pinned, padded)
            pl.BlockSpec((1, Opad), lambda i: (0, 0)),        # folded bias 2 (padded)
        ],
        out_specs=pl.BlockSpec((tb, Opad), lambda i: (i, 0)),
        compiler_params=pltpu.CompilerParams(
            dimension_semantics=("parallel",),                # batch tiles shard across TCs
            vmem_limit_bytes=32 * 1024 * 1024,                # footprint ~6 MiB; <= v7x 64 MiB
        ),
    )(
        xin,
        w1full.astype(jnp.bfloat16),
        b1.reshape(1, hidden).astype(jnp.float32),
        w2p.astype(jnp.bfloat16),
        b2p,
    )

    return out[:, :out_f]


# ---------------------------------------------------------------------------
# Pure-JAX f32 reference (mirrors the PyTorch module in eval mode)
# ---------------------------------------------------------------------------
def head_forward_ref(x0, x1, x2, params):
    B, Cin, H, W = x0.shape
    Cout = params["c_w"].shape[0]
    xs = x0[:, :, ::4, ::4]
    Ho, Wo = xs.shape[2], xs.shape[3]
    xm = jnp.transpose(xs, (0, 2, 3, 1)).reshape(B * Ho * Wo, Cin)
    c0 = xm @ params["c_w"].reshape(Cout, Cin).T + params["c_b"]
    c0 = jnp.transpose(c0.reshape(B, Ho, Wo, Cout), (0, 3, 1, 2))
    flat = jnp.concatenate([c0, x1, x2], axis=1).reshape(B, -1)
    xn = (flat - params["bn1_m"]) / jnp.sqrt(params["bn1_v"] + EPS) * params["bn1_g"] + params["bn1_b"]
    h = jnp.maximum(xn @ params["l_w"].T + params["l_b"], 0.0)
    hn = (h - params["bn2_m"]) / jnp.sqrt(params["bn2_v"] + EPS) * params["bn2_g"] + params["bn2_b"]
    return hn @ params["o_w"].T + params["o_b"]


if __name__ == "__main__":
    key = jax.random.PRNGKey(0)
    ks = jax.random.split(key, 16)

    # Small example shapes (channel counts 1280/2048 are fixed by the module).
    B = 2
    x0 = jax.random.normal(ks[0], (B, 1280, 4, 4), jnp.float32)  # conv -> (B, 2048, 1, 1)
    x1 = jax.random.normal(ks[1], (B, 64, 1, 1), jnp.float32)
    x2 = jax.random.normal(ks[2], (B, 64, 1, 1), jnp.float32)

    in_f = 2048 * 1 * 1 + 64 * 1 * 1 + 64 * 1 * 1                # 2176
    hidden = 512
    out_f = 8

    scale = 0.02
    params = {
        "c_w": scale * jax.random.normal(ks[3], (2048, 1280, 1, 1), jnp.float32),
        "c_b": scale * jax.random.normal(ks[4], (2048,), jnp.float32),
        "bn1_g": 1.0 + 0.1 * jax.random.normal(ks[5], (in_f,), jnp.float32),
        "bn1_b": 0.1 * jax.random.normal(ks[6], (in_f,), jnp.float32),
        "bn1_m": 0.1 * jax.random.normal(ks[7], (in_f,), jnp.float32),
        "bn1_v": jax.random.uniform(ks[8], (in_f,), jnp.float32, 0.5, 1.5),
        "l_w": scale * jax.random.normal(ks[9], (hidden, in_f), jnp.float32),
        "l_b": scale * jax.random.normal(ks[10], (hidden,), jnp.float32),
        "bn2_g": 1.0 + 0.1 * jax.random.normal(ks[11], (hidden,), jnp.float32),
        "bn2_b": 0.1 * jax.random.normal(ks[12], (hidden,), jnp.float32),
        "bn2_m": 0.1 * jax.random.normal(ks[13], (hidden,), jnp.float32),
        "bn2_v": jax.random.uniform(ks[14], (hidden,), jnp.float32, 0.5, 1.5),
        "o_w": scale * jax.random.normal(ks[15], (out_f, hidden), jnp.float32),
        "o_b": jnp.zeros((out_f,), jnp.float32),
    }

    out = head_forward(x0, x1, x2, params)
    out = jax.block_until_ready(out)

    ref = head_forward_ref(x0, x1, x2, params)
    assert out.shape == (B, out_f), out.shape
    assert jnp.allclose(out, ref, rtol=2e-2, atol=2e-2), "mismatch vs reference"

    print("KERNEL_OK")
</pallas_src>

<mosaic_0001>
module attributes {stable_mosaic.version = 11 : i64} {
  func.func @head_fused_kernel(%arg0: i32, %arg1: memref<2x1408xbf16, #tpu.memory_space<vmem>>, %arg2: memref<1408x512xbf16, #tpu.memory_space<vmem>>, %arg3: memref<1x512xf32, #tpu.memory_space<vmem>>, %arg4: memref<512x128xbf16, #tpu.memory_space<vmem>>, %arg5: memref<1x128xf32, #tpu.memory_space<vmem>>, %arg6: memref<2x128xf32, #tpu.memory_space<vmem>>) attributes {dimension_semantics = [#tpu.dimension_semantics<parallel>], iteration_bounds = array<i64: 1>, scalar_prefetch = 0 : i64, scratch_operands = 0 : i64, tpu.core_type = #tpu.core_type<tc>, window_params = [{transform_indices = @transform_0, window_bounds = array<i64: 2, 1408>}, {pipeline_mode = #tpu.pipeline_mode<synchronous>, transform_indices = @transform_1, window_bounds = array<i64: 1408, 512>}, {pipeline_mode = #tpu.pipeline_mode<synchronous>, transform_indices = @transform_2, window_bounds = array<i64: 1, 512>}, {pipeline_mode = #tpu.pipeline_mode<synchronous>, transform_indices = @transform_3, window_bounds = array<i64: 512, 128>}, {pipeline_mode = #tpu.pipeline_mode<synchronous>, transform_indices = @transform_4, window_bounds = array<i64: 1, 128>}, {transform_indices = @transform_5, window_bounds = array<i64: 2, 128>}]} {
    %c0 = arith.constant 0 : index
    %c0_0 = arith.constant 0 : index
    %0 = vector.load %arg1[%c0, %c0_0] : memref<2x1408xbf16, #tpu.memory_space<vmem>>, vector<2x1408xbf16>
    %c0_1 = arith.constant 0 : index
    %c0_2 = arith.constant 0 : index
    %1 = vector.load %arg2[%c0_1, %c0_2] : memref<1408x512xbf16, #tpu.memory_space<vmem>>, vector<1408x512xbf16>
    %cst = arith.constant dense<0.000000e+00> : vector<2x512xf32>
    %2 = tpu.matmul %0, %1, %cst {dimension_numbers = #tpu.dot_dimension_numbers<[1], [0], [0], [1], [0, 0, 1, 1], [], []>} : vector<2x1408xbf16>, vector<1408x512xbf16>, vector<2x512xf32> -> vector<2x512xf32>
    %c0_3 = arith.constant 0 : index
    %c0_4 = arith.constant 0 : index
    %3 = vector.load %arg3[%c0_3, %c0_4] : memref<1x512xf32, #tpu.memory_space<vmem>>, vector<1x512xf32>
    %4 = vector.broadcast %3 : vector<1x512xf32> to vector<2x512xf32>
    %5 = arith.addf %2, %4 : vector<2x512xf32>
    %cst_5 = arith.constant 0.000000e+00 : f32
    %6 = vector.broadcast %cst_5 : f32 to vector<2x512xf32>
    %7 = arith.maximumf %5, %6 : vector<2x512xf32>
    %8 = arith.truncf %7 : vector<2x512xf32> to vector<2x512xbf16>
    %c0_6 = arith.constant 0 : index
    %c0_7 = arith.constant 0 : index
    %9 = vector.load %arg4[%c0_6, %c0_7] : memref<512x128xbf16, #tpu.memory_space<vmem>>, vector<512x128xbf16>
    %cst_8 = arith.constant dense<0.000000e+00> : vector<2x128xf32>
    %10 = tpu.matmul %8, %9, %cst_8 {dimension_numbers = #tpu.dot_dimension_numbers<[1], [0], [0], [1], [0, 0, 1, 1], [], []>} : vector<2x512xbf16>, vector<512x128xbf16>, vector<2x128xf32> -> vector<2x128xf32>
    %c0_9 = arith.constant 0 : index
    %c0_10 = arith.constant 0 : index
    %11 = vector.load %arg5[%c0_9, %c0_10] : memref<1x128xf32, #tpu.memory_space<vmem>>, vector<1x128xf32>
    %12 = vector.broadcast %11 : vector<1x128xf32> to vector<2x128xf32>
    %13 = arith.addf %10, %12 : vector<2x128xf32>
    %c0_11 = arith.constant 0 : index
    %c0_12 = arith.constant 0 : index
    %14 = vector.load %arg6[%c0_11, %c0_12] : memref<2x128xf32, #tpu.memory_space<vmem>>, vector<2x128xf32>
    tpu.vector_store %arg6[%c0_11, %c0_12], %13 {strides = array<i32>} : memref<2x128xf32, #tpu.memory_space<vmem>>, vector<2x128xf32>,
    return
  }
  func.func @transform_0(%arg0: i32) -> (i32, i32) {
    %c0_i32 = arith.constant 0 : i32
    %c0_i32_0 = arith.constant 0 : i32
    return %arg0, %c0_i32 : i32, i32
  }
  func.func @transform_1(%arg0: i32) -> (i32, i32) {
    %c0_i32 = arith.constant 0 : i32
    %c0_i32_0 = arith.constant 0 : i32
    %c0_i32_1 = arith.constant 0 : i32
    return %c0_i32, %c0_i32_0 : i32, i32
  }
  func.func @transform_2(%arg0: i32) -> (i32, i32) {
    %c0_i32 = arith.constant 0 : i32
    %c0_i32_0 = arith.constant 0 : i32
    %c0_i32_1 = arith.constant 0 : i32
    return %c0_i32, %c0_i32_0 : i32, i32
  }
  func.func @transform_3(%arg0: i32) -> (i32, i32) {
    %c0_i32 = arith.constant 0 : i32
    %c0_i32_0 = arith.constant 0 : i32
    %c0_i32_1 = arith.constant 0 : i32
    return %c0_i32, %c0_i32_0 : i32, i32
  }
  func.func @transform_4(%arg0: i32) -> (i32, i32) {
    %c0_i32 = arith.constant 0 : i32
    %c0_i32_0 = arith.constant 0 : i32
    %c0_i32_1 = arith.constant 0 : i32
    return %c0_i32, %c0_i32_0 : i32, i32
  }
  func.func @transform_5(%arg0: i32) -> (i32, i32) {
    %c0_i32 = arith.constant 0 : i32
    %c0_i32_0 = arith.constant 0 : i32
    return %arg0, %c0_i32 : i32, i32
  }
}

</mosaic_0001>

<llo_original>
// kernel: tpu_custom_call.1
$region0: #{tpu_custom_call.1}
  #allocation0 [shape = 'u32[]', space=smem, size = 0x4, offset = 0x4, fixed_abs, tag = 'smem constant byte address 0x4 - core index']
  #allocation1 [shape = 'u32[72,128]{1,0:T(1,128)}', space=vmem, size = 0x9000, scoped, tag = 'internal scratch']
  %s0 = inlined_call_operand.hbm [shape: bf16[2,1408], index: 0, kind: input, shape index: {}]
  %s1 = inlined_call_operand.hbm [shape: bf16[1408,512], index: 1, kind: input, shape index: {}]
  %s2 = inlined_call_operand.hbm [shape: f32[1,512], index: 2, kind: input, shape index: {}]
  %s3 = inlined_call_operand.hbm [shape: bf16[512,128], index: 3, kind: input, shape index: {}]
  %s4 = inlined_call_operand.hbm [shape: f32[1,128], index: 4, kind: input, shape index: {}]
  %s5 = inlined_call_operand.hbm [shape: f32[2,128], index: 5, kind: output, shape index: {}]
  %s6 = sld [smem:[#allocation0]]
  $region50: #{tpu_custom_call.1} parent=0
    _
  %s8 = ssub.s32 1, %s6
  %s9 = scalar_select 0, %s8, %s6
  $region1: #{tpu_custom_call.1} parent=0
    #allocation2 [shape = 'u8[5632]{0}', space=vmem, size = 0x1800, scoped, tag = 'input window, operand 0, single buffered']
    #allocation3 [shape = 's32[1]{0}', space=sflag, size = 0x4, scoped, tag = 'scoped memory for tpu_custom_call.1']
    #allocation4 [shape = 's32[1]{0}', space=sflag, size = 0x4, scoped, tag = 'scoped memory for tpu_custom_call.1']
    #allocation5 [shape = 'u8[1441792]{0}', space=vmem, size = 0x160000, scoped, tag = 'input window, operand 1, single buffered']
    #allocation6 [shape = 's32[1]{0}', space=sflag, size = 0x4, scoped, tag = 'scoped memory for tpu_custom_call.1']
    #allocation7 [shape = 'u8[2048]{0}', space=vmem, size = 0x800, scoped, tag = 'input window, operand 2, single buffered']
    #allocation8 [shape = 'u8[131072]{0}', space=vmem, size = 0x20000, scoped, tag = 'input window, operand 3, single buffered']
    #allocation9 [shape = 's32[1]{0}', space=sflag, size = 0x4, scoped, tag = 'scoped memory for tpu_custom_call.1']
    #allocation10 [shape = 'u8[512]{0}', space=vmem, size = 0x400, scoped, tag = 'input window, operand 4, single buffered']
    #allocation11 [shape = 'u8[1024]{0}', space=vmem, size = 0x400, scoped, tag = 'output window, operand 0, single buffered']
    %10 = vsyncpa [#allocation3], 0
    %11 = vsyncpa [#allocation6], 0
    %12 = vsyncpa [#allocation9], 0
    %13 = vsyncpa [#allocation4], 0
    // Predicated region
    $region2: #{tpu_custom_call.1} parent=1 // pred_check
      _
    $region3: #{tpu_custom_call.1} parent=1 // pred_check_branch
      %15 = sbr.rel (0) target = $region5
    $region4: #{tpu_custom_call.1} parent=1 // pred_region
      %17 = vsyncadd [#allocation3], 0
      %s19 = sshll.u32 %s0, 4
      %s20 = int_to_ptr.hbm [resolvable:$true] %s19
      %s21 = sshll.u32 [#allocation2], 4
      %s22 = int_to_ptr.vmem [resolvable:$true] %s21
      %24 = dma.hbm_to_vmem [thread:$0]  %s20, 176, %s22, [#allocation3]
    $region5: #{tpu_custom_call.1} parent=1 // pred_fallthru
      _
    // Predicated region
    $region6: #{tpu_custom_call.1} parent=1 // pred_check
      _
    $region7: #{tpu_custom_call.1} parent=1 // pred_check_branch
      %26 = sbr.rel (0) target = $region9
    $region8: #{tpu_custom_call.1} parent=1 // pred_region
      %28 = vsyncadd [#allocation6], 0
      %s29 = sshll.u32 %s1, 4
      %s30 = int_to_ptr.hbm [resolvable:$true] %s29
      %s31 = sshll.u32 [#allocation5], 4
      %s32 = int_to_ptr.vmem [resolvable:$true] %s31
      %37 = dma.hbm_to_vmem [thread:$0]  %s30, 45056, %s32, [#allocation6], 256, 256, 16
    $region9: #{tpu_custom_call.1} parent=1 // pred_fallthru
      _
    // Predicated region
    $region10: #{tpu_custom_call.1} parent=1 // pred_check
      _
    $region11: #{tpu_custom_call.1} parent=1 // pred_check_branch
      %39 = sbr.rel (0) target = $region13
    $region12: #{tpu_custom_call.1} parent=1 // pred_region
      %41 = vsyncadd [#allocation6], 0
      %s43 = sshll.u32 %s2, 4
      %s44 = int_to_ptr.hbm [resolvable:$true] %s43
      %s45 = sshll.u32 [#allocation7], 4
      %s46 = int_to_ptr.vmem [resolvable:$true] %s45
      %48 = dma.hbm_to_vmem [thread:$0]  %s44, 64, %s46, [#allocation6]
    $region13: #{tpu_custom_call.1} parent=1 // pred_fallthru
      _
    // Predicated region
    $region14: #{tpu_custom_call.1} parent=1 // pred_check
      _
    $region15: #{tpu_custom_call.1} parent=1 // pred_check_branch
      %50 = sbr.rel (0) target = $region17
    $region16: #{tpu_custom_call.1} parent=1 // pred_region
      %52 = vsyncadd [#allocation9], 0
      %s53 = sshll.u32 %s3, 4
      %s54 = int_to_ptr.hbm [resolvable:$true] %s53
      %s55 = sshll.u32 [#allocation8], 4
      %s56 = int_to_ptr.vmem [resolvable:$true] %s55
      %61 = dma.hbm_to_vmem [thread:$0]  %s54, 4096, %s56, [#allocation9], 64, 64, 4
    $region17: #{tpu_custom_call.1} parent=1 // pred_fallthru
      _
    // Predicated region
    $region18: #{tpu_custom_call.1} parent=1 // pred_check
      _
    $region19: #{tpu_custom_call.1} parent=1 // pred_check_branch
      %63 = sbr.rel (0) target = $region21
    $region20: #{tpu_custom_call.1} parent=1 // pred_region
      %65 = vsyncadd [#allocation9], 0
      %s67 = sshll.u32 %s4, 4
      %s68 = int_to_ptr.hbm [resolvable:$true] %s67
      %s69 = sshll.u32 [#allocation10], 4
      %s70 = int_to_ptr.vmem [resolvable:$true] %s69
      %72 = dma.hbm_to_vmem [thread:$0]  %s68, 16, %s70, [#allocation9]
    $region21: #{tpu_custom_call.1} parent=1 // pred_fallthru
      _
    // Predicated region
    $region22: #{tpu_custom_call.1} parent=1 // pred_check
      _
    $region23: #{tpu_custom_call.1} parent=1 // pred_check_branch
      %74 = sbr.rel (0) target = $region25
    $region24: #{tpu_custom_call.1} parent=1 // pred_region
      %76 = dma.done [#allocation3], 176
    $region25: #{tpu_custom_call.1} parent=1 // pred_fallthru
      _
    // Predicated region
    $region26: #{tpu_custom_call.1} parent=1 // pred_check
      _
    $region27: #{tpu_custom_call.1} parent=1 // pred_check_branch
      %78 = sbr.rel (0) target = $region29
    $region28: #{tpu_custom_call.1} parent=1 // pred_region
      %80 = dma.done [#allocation6], 45056
    $region29: #{tpu_custom_call.1} parent=1 // pred_fallthru
      _
    // Predicated region
    $region30: #{tpu_custom_call.1} parent=1 // pred_check
      _
    $region31: #{tpu_custom_call.1} parent=1 // pred_check_branch
      %82 = sbr.rel (0) target = $region33
    $region32: #{tpu_custom_call.1} parent=1 // pred_region
      %84 = dma.done [#allocation6], 64
    $region33: #{tpu_custom_call.1} parent=1 // pred_fallthru
      _
    // Predicated region
    $region34: #{tpu_custom_call.1} parent=1 // pred_check
      _
    $region35: #{tpu_custom_call.1} parent=1 // pred_check_branch
      %86 = sbr.rel (0) target = $region37
    $region36: #{tpu_custom_call.1} parent=1 // pred_region
      %88 = dma.done [#allocation9], 4096
    $region37: #{tpu_custom_call.1} parent=1 // pred_fallthru
      _
    // Predicated region
    $region38: #{tpu_custom_call.1} parent=1 // pred_check
      _
    $region39: #{tpu_custom_call.1} parent=1 // pred_check_branch
      %90 = sbr.rel (0) target = $region41
    $region40: #{tpu_custom_call.1} parent=1 // pred_region
      %92 = dma.done [#allocation9], 16
    $region41: #{tpu_custom_call.1} parent=1 // pred_fallthru
      _
    %v93 = vld [vmem:[#allocation2] sm:$0xff]
    %v94 = vld [vmem:[#allocation2 + $0x8] sm:$0x7]
    %v95 = vld [vmem:[#allocation5] sm:$0xff]
    %v96 = vld [vmem:[#allocation5 + $0x8] sm:$0xff]
    %v97 = vld [vmem:[#allocation5 + $0x10] sm:$0xff]
    %v98 = vld [vmem:[#allocation5 + $0x18] sm:$0xff]
    %v99 = vld [vmem:[#allocation5 + $0x20] sm:$0xff]
    %v100 = vld [vmem:[#allocation5 + $0x28] sm:$0xff]
    %v101 = vld [vmem:[#allocation5 + $0x30] sm:$0xff]
    %v102 = vld [vmem:[#allocation5 + $0x38] sm:$0xff]
    %v103 = vld [vmem:[#allocation5 + $0x40] sm:$0xff]
    %v104 = vld [vmem:[#allocation5 + $0x48] sm:$0xff]
    %v105 = vld [vmem:[#allocation5 + $0x50] sm:$0xff]
    %v106 = vld [vmem:[#allocation5 + $0x58] sm:$0xff]
    %v107 = vld [vmem:[#allocation5 + $0x60] sm:$0xff]
    %v108 = vld [vmem:[#allocation5 + $0x68] sm:$0xff]
    %v109 = vld [vmem:[#allocation5 + $0x70] sm:$0xff]
    %v110 = vld [vmem:[#allocation5 + $0x78] sm:$0xff]
    %v111 = vld [vmem:[#allocation5 + $0x80] sm:$0xff]
    %v112 = vld [vmem:[#allocation5 + $0x88] sm:$0xff]
    %v113 = vld [vmem:[#allocation5 + $0x90] sm:$0xff]
    %v114 = vld [vmem:[#allocation5 + $0x98] sm:$0xff]
    %v115 = vld [vmem:[#allocation5 + $0xa0] sm:$0xff]
    %v116 = vld [vmem:[#allocation5 + $0xa8] sm:$0xff]
    %v117 = vld [vmem:[#allocation5 + $0xb0] sm:$0xff]
    %v118 = vld [vmem:[#allocation5 + $0xb8] sm:$0xff]
    %v119 = vld [vmem:[#allocation5 + $0xc0] sm:$0xff]
    %v120 = vld [vmem:[#allocation5 + $0xc8] sm:$0xff]
    %v121 = vld [vmem:[#allocation5 + $0xd0] sm:$0xff]
    %v122 = vld [vmem:[#allocation5 + $0xd8] sm:$0xff]
    %v123 = vld [vmem:[#allocation5 + $0xe0] sm:$0xff]
    %v124 = vld [vmem:[#allocation5 + $0xe8] sm:$0xff]
    %v125 = vld [vmem:[#allocation5 + $0xf0] sm:$0xff]
    %v126 = vld [vmem:[#allocation5 + $0xf8] sm:$0xff]
    %v127 = vld [vmem:[#allocation5 + $0x100] sm:$0xff]
    %v128 = vld [vmem:[#allocation5 + $0x108] sm:$0xff]
    %v129 = vld [vmem:[#allocation5 + $0x110] sm:$0xff]
    %v130 = vld [vmem:[#allocation5 + $0x118] sm:$0xff]
    %v131 = vld [vmem:[#allocation5 + $0x120] sm:$0xff]
    %v132 = vld [vmem:[#allocation5 + $0x128] sm:$0xff]
    %v133 = vld [vmem:[#allocation5 + $0x130] sm:$0xff]
    %v134 = vld [vmem:[#allocation5 + $0x138] sm:$0xff]
    %v135 = vld [vmem:[#allocation5 + $0x140] sm:$0xff]
    %v136 = vld [vmem:[#allocation5 + $0x148] sm:$0xff]
    %v137 = vld [vmem:[#allocation5 + $0x150] sm:$0xff]
    %v138 = vld [vmem:[#allocation5 + $0x158] sm:$0xff]
    %v139 = vld [vmem:[#allocation5 + $0x160] sm:$0xff]
    %v140 = vld [vmem:[#allocation5 + $0x168] sm:$0xff]
    %v141 = vld [vmem:[#allocation5 + $0x170] sm:$0xff]
    %v142 = vld [vmem:[#allocation5 + $0x178] sm:$0xff]
    %v143 = vld [vmem:[#allocation5 + $0x180] sm:$0xff]
    %v144 = vld [vmem:[#allocation5 + $0x188] sm:$0xff]
    %v145 = vld [vmem:[#allocation5 + $0x190] sm:$0xff]
    %v146 = vld [vmem:[#allocation5 + $0x198] sm:$0xff]
    %v147 = vld [vmem:[#allocation5 + $0x1a0] sm:$0xff]
    %v148 = vld [vmem:[#allocation5 + $0x1a8] sm:$0xff]
    %v149 = vld [vmem:[#allocation5 + $0x1b0] sm:$0xff]
    %v150 = vld [vmem:[#allocation5 + $0x1b8] sm:$0xff]
    %v151 = vld [vmem:[#allocation5 + $0x1c0] sm:$0xff]
    %v152 = vld [vmem:[#allocation5 + $0x1c8] sm:$0xff]
    %v153 = vld [vmem:[#allocation5 + $0x1d0] sm:$0xff]
    %v154 = vld [vmem:[#allocation5 + $0x1d8] sm:$0xff]
    %v155 = vld [vmem:[#allocation5 + $0x1e0] sm:$0xff]
    %v156 = vld [vmem:[#allocation5 + $0x1e8] sm:$0xff]
    %v157 = vld [vmem:[#allocation5 + $0x1f0] sm:$0xff]
    %v158 = vld [vmem:[#allocation5 + $0x1f8] sm:$0xff]
    %v159 = vld [vmem:[#allocation5 + $0x200] sm:$0xff]
    %v160 = vld [vmem:[#allocation5 + $0x208] sm:$0xff]
    %v161 = vld [vmem:[#allocation5 + $0x210] sm:$0xff]
    %v162 = vld [vmem:[#allocation5 + $0x218] sm:$0xff]
    %v163 = vld [vmem:[#allocation5 + $0x220] sm:$0xff]
    %v164 = vld [vmem:[#allocation5 + $0x228] sm:$0xff]
    %v165 = vld [vmem:[#allocation5 + $0x230] sm:$0xff]
    %v166 = vld [vmem:[#allocation5 + $0x238] sm:$0xff]
    %v167 = vld [vmem:[#allocation5 + $0x240] sm:$0xff]
    %v168 = vld [vmem:[#allocation5 + $0x248] sm:$0xff]
    %v169 = vld [vmem:[#allocation5 + $0x250] sm:$0xff]
    %v170 = vld [vmem:[#allocation5 + $0x258] sm:$0xff]
    %v171 = vld [vmem:[#allocation5 + $0x260] sm:$0xff]
    %v172 = vld [vmem:[#allocation5 + $0x268] sm:$0xff]
    %v173 = vld [vmem:[#allocation5 + $0x270] sm:$0xff]
    %v174 = vld [vmem:[#allocation5 + $0x278] sm:$0xff]
    %v175 = vld [vmem:[#allocation5 + $0x280] sm:$0xff]
    %v176 = vld [vmem:[#allocation5 + $0x288] sm:$0xff]
    %v177 = vld [vmem:[#allocation5 + $0x290] sm:$0xff]
    %v178 = vld [vmem:[#allocation5 + $0x298] sm:$0xff]
    %v179 = vld [vmem:[#allocation5 + $0x2a0] sm:$0xff]
    %v180 = vld [vmem:[#allocation5 + $0x2a8] sm:$0xff]
    %v181 = vld [vmem:[#allocation5 + $0x2b0] sm:$0xff]
    %v182 = vld [vmem:[#allocation5 + $0x2b8] sm:$0xff]
    %v183 = vld [vmem:[#allocation5 + $0x2c0] sm:$0xff]
    %v184 = vld [vmem:[#allocation5 + $0x2c8] sm:$0xff]
    %v185 = vld [vmem:[#allocation5 + $0x2d0] sm:$0xff]
    %v186 = vld [vmem:[#allocation5 + $0x2d8] sm:$0xff]
    %v187 = vld [vmem:[#allocation5 + $0x2e0] sm:$0xff]
    %v188 = vld [vmem:[#allocation5 + $0x2e8] sm:$0xff]
    %v189 = vld [vmem:[#allocation5 + $0x2f0] sm:$0xff]
    %v190 = vld [vmem:[#allocation5 + $0x2f8] sm:$0xff]
    %v191 = vld [vmem:[#allocation5 + $0x300] sm:$0xff]
    %v192 = vld [vmem:[#allocation5 + $0x308] sm:$0xff]
    %v193 = vld [vmem:[#allocation5 + $0x310] sm:$0xff]
    %v194 = vld [vmem:[#allocation5 + $0x318] sm:$0xff]
    %v195 = vld [vmem:[#allocation5 + $0x320] sm:$0xff]
    %v196 = vld [vmem:[#allocation5 + $0x328] sm:$0xff]
    %v197 = vld [vmem:[#allocation5 + $0x330] sm:$0xff]
    %v198 = vld [vmem:[#allocation5 + $0x338] sm:$0xff]
    %v199 = vld [vmem:[#allocation5 + $0x340] sm:$0xff]
    %v200 = vld [vmem:[#allocation5 + $0x348] sm:$0xff]
    %v201 = vld [vmem:[#allocation5 + $0x350] sm:$0xff]
    %v202 = vld [vmem:[#allocation5 + $0x358] sm:$0xff]
    %v203 = vld [vmem:[#allocation5 + $0x360] sm:$0xff]
    %v204 = vld [vmem:[#allocation5 + $0x368] sm:$0xff]
    %v205 = vld [vmem:[#allocation5 + $0x370] sm:$0xff]
    %v206 = vld [vmem:[#allocation5 + $0x378] sm:$0xff]
    %v207 = vld [vmem:[#allocation5 + $0x380] sm:$0xff]
    %v208 = vld [vmem:[#allocation5 + $0x388] sm:$0xff]
    %v209 = vld [vmem:[#allocation5 + $0x390] sm:$0xff]
    %v210 = vld [vmem:[#allocation5 + $0x398] sm:$0xff]
    %v211 = vld [vmem:[#allocation5 + $0x3a0] sm:$0xff]
    %v212 = vld [vmem:[#allocation5 + $0x3a8] sm:$0xff]
    %v213 = vld [vmem:[#allocation5 + $0x3b0] sm:$0xff]
    %v214 = vld [vmem:[#allocation5 + $0x3b8] sm:$0xff]
    %v215 = vld [vmem:[#allocation5 + $0x3c0] sm:$0xff]
    %v216 = vld [vmem:[#allocation5 + $0x3c8] sm:$0xff]
    %v217 = vld [vmem:[#allocation5 + $0x3d0] sm:$0xff]
    %v218 = vld [vmem:[#allocation5 + $0x3d8] sm:$0xff]
    %v219 = vld [vmem:[#allocation5 + $0x3e0] sm:$0xff]
    %v220 = vld [vmem:[#allocation5 + $0x3e8] sm:$0xff]
    %v221 = vld [vmem:[#allocation5 + $0x3f0] sm:$0xff]
    %v222 = vld [vmem:[#allocation5 + $0x3f8] sm:$0xff]
    %v223 = vld [vmem:[#allocation5 + $0x400] sm:$0xff]
    %v224 = vld [vmem:[#allocation5 + $0x408] sm:$0xff]
    %v225 = vld [vmem:[#allocation5 + $0x410] sm:$0xff]
    %v226 = vld [vmem:[#allocation5 + $0x418] sm:$0xff]
    %v227 = vld [vmem:[#allocation5 + $0x420] sm:$0xff]
    %v228 = vld [vmem:[#allocation5 + $0x428] sm:$0xff]
    %v229 = vld [vmem:[#allocation5 + $0x430] sm:$0xff]
    %v230 = vld [vmem:[#allocation5 + $0x438] sm:$0xff]
    %v231 = vld [vmem:[#allocation5 + $0x440] sm:$0xff]
    %v232 = vld [vmem:[#allocation5 + $0x448] sm:$0xff]
    %v233 = vld [vmem:[#allocation5 + $0x450] sm:$0xff]
    %v234 = vld [vmem:[#allocation5 + $0x458] sm:$0xff]
    %v235 = vld [vmem:[#allocation5 + $0x460] sm:$0xff]
    %v236 = vld [vmem:[#allocation5 + $0x468] sm:$0xff]
    %v237 = vld [vmem:[#allocation5 + $0x470] sm:$0xff]
    %v238 = vld [vmem:[#allocation5 + $0x478] sm:$0xff]
    %v239 = vld [vmem:[#allocation5 + $0x480] sm:$0xff]
    %v240 = vld [vmem:[#allocation5 + $0x488] sm:$0xff]
    %v241 = vld [vmem:[#allocation5 + $0x490] sm:$0xff]
    %v242 = vld [vmem:[#allocation5 + $0x498] sm:$0xff]
    %v243 = vld [vmem:[#allocation5 + $0x4a0] sm:$0xff]
    %v244 = vld [vmem:[#allocation5 + $0x4a8] sm:$0xff]
    %v245 = vld [vmem:[#allocation5 + $0x4b0] sm:$0xff]
    %v246 = vld [vmem:[#allocation5 + $0x4b8] sm:$0xff]
    %v247 = vld [vmem:[#allocation5 + $0x4c0] sm:$0xff]
    %v248 = vld [vmem:[#allocation5 + $0x4c8] sm:$0xff]
    %v249 = vld [vmem:[#allocation5 + $0x4d0] sm:$0xff]
    %v250 = vld [vmem:[#allocation5 + $0x4d8] sm:$0xff]
    %v251 = vld [vmem:[#allocation5 + $0x4e0] sm:$0xff]
    %v252 = vld [vmem:[#allocation5 + $0x4e8] sm:$0xff]
    %v253 = vld [vmem:[#allocation5 + $0x4f0] sm:$0xff]
    %v254 = vld [vmem:[#allocation5 + $0x4f8] sm:$0xff]
    %v255 = vld [vmem:[#allocation5 + $0x500] sm:$0xff]
    %v256 = vld [vmem:[#allocation5 + $0x508] sm:$0xff]
    %v257 = vld [vmem:[#allocation5 + $0x510] sm:$0xff]
    %v258 = vld [vmem:[#allocation5 + $0x518] sm:$0xff]
    %v259 = vld [vmem:[#allocation5 + $0x520] sm:$0xff]
    %v260 = vld [vmem:[#allocation5 + $0x528] sm:$0xff]
    %v261 = vld [vmem:[#allocation5 + $0x530] sm:$0xff]
    %v262 = vld [vmem:[#allocation5 + $0x538] sm:$0xff]
    %v263 = vld [vmem:[#allocation5 + $0x540] sm:$0xff]
    %v264 = vld [vmem:[#allocation5 + $0x548] sm:$0xff]
    %v265 = vld [vmem:[#allocation5 + $0x550] sm:$0xff]
    %v266 = vld [vmem:[#allocation5 + $0x558] sm:$0xff]
    %v267 = vld [vmem:[#allocation5 + $0x560] sm:$0xff]
    %v268 = vld [vmem:[#allocation5 + $0x568] sm:$0xff]
    %v269 = vld [vmem:[#allocation5 + $0x570] sm:$0xff]
    %v270 = vld [vmem:[#allocation5 + $0x578] sm:$0xff]
    %v271 = vld [vmem:[#allocation5 + $0x580] sm:$0xff]
    %v272 = vld [vmem:[#allocation5 + $0x588] sm:$0xff]
    %v273 = vld [vmem:[#allocation5 + $0x590] sm:$0xff]
    %v274 = vld [vmem:[#allocation5 + $0x598] sm:$0xff]
    %v275 = vld [vmem:[#allocation5 + $0x5a0] sm:$0xff]
    %v276 = vld [vmem:[#allocation5 + $0x5a8] sm:$0xff]
    %v277 = vld [vmem:[#allocation5 + $0x5b0] sm:$0xff]
    %v278 = vld [vmem:[#allocation5 + $0x5b8] sm:$0xff]
    %v279 = vld [vmem:[#allocation5 + $0x5c0] sm:$0xff]
    %v280 = vld [vmem:[#allocation5 + $0x5c8] sm:$0xff]
    %v281 = vld [vmem:[#allocation5 + $0x5d0] sm:$0xff]
    %v282 = vld [vmem:[#allocation5 + $0x5d8] sm:$0xff]
    %v283 = vld [vmem:[#allocation5 + $0x5e0] sm:$0xff]
    %v284 = vld [vmem:[#allocation5 + $0x5e8] sm:$0xff]
    %v285 = vld [vmem:[#allocation5 + $0x5f0] sm:$0xff]
    %v286 = vld [vmem:[#allocation5 + $0x5f8] sm:$0xff]
    %v287 = vld [vmem:[#allocation5 + $0x600] sm:$0xff]
    %v288 = vld [vmem:[#allocation5 + $0x608] sm:$0xff]
    %v289 = vld [vmem:[#allocation5 + $0x610] sm:$0xff]
    %v290 = vld [vmem:[#allocation5 + $0x618] sm:$0xff]
    %v291 = vld [vmem:[#allocation5 + $0x620] sm:$0xff]
    %v292 = vld [vmem:[#allocation5 + $0x628] sm:$0xff]
    %v293 = vld [vmem:[#allocation5 + $0x630] sm:$0xff]
    %v294 = vld [vmem:[#allocation5 + $0x638] sm:$0xff]
    %v295 = vld [vmem:[#allocation5 + $0x640] sm:$0xff]
    %v296 = vld [vmem:[#allocation5 + $0x648] sm:$0xff]
    %v297 = vld [vmem:[#allocation5 + $0x650] sm:$0xff]
    %v298 = vld [vmem:[#allocation5 + $0x658] sm:$0xff]
    %v299 = vld [vmem:[#allocation5 + $0x660] sm:$0xff]
    %v300 = vld [vmem:[#allocation5 + $0x668] sm:$0xff]
    %v301 = vld [vmem:[#allocation5 + $0x670] sm:$0xff]
    %v302 = vld [vmem:[#allocation5 + $0x678] sm:$0xff]
    %v303 = vld [vmem:[#allocation5 + $0x680] sm:$0xff]
    %v304 = vld [vmem:[#allocation5 + $0x688] sm:$0xff]
    %v305 = vld [vmem:[#allocation5 + $0x690] sm:$0xff]
    %v306 = vld [vmem:[#allocation5 + $0x698] sm:$0xff]
    %v307 = vld [vmem:[#allocation5 + $0x6a0] sm:$0xff]
    %v308 = vld [vmem:[#allocation5 + $0x6a8] sm:$0xff]
    %v309 = vld [vmem:[#allocation5 + $0x6b0] sm:$0xff]
    %v310 = vld [vmem:[#allocation5 + $0x6b8] sm:$0xff]
    %v311 = vld [vmem:[#allocation5 + $0x6c0] sm:$0xff]
    %v312 = vld [vmem:[#allocation5 + $0x6c8] sm:$0xff]
    %v313 = vld [vmem:[#allocation5 + $0x6d0] sm:$0xff]
    %v314 = vld [vmem:[#allocation5 + $0x6d8] sm:$0xff]
    %v315 = vld [vmem:[#allocation5 + $0x6e0] sm:$0xff]
    %v316 = vld [vmem:[#allocation5 + $0x6e8] sm:$0xff]
    %v317 = vld [vmem:[#allocation5 + $0x6f0] sm:$0xff]
    %v318 = vld [vmem:[#allocation5 + $0x6f8] sm:$0xff]
    %v319 = vld [vmem:[#allocation5 + $0x700] sm:$0xff]
    %v320 = vld [vmem:[#allocation5 + $0x708] sm:$0xff]
    %v321 = vld [vmem:[#allocation5 + $0x710] sm:$0xff]
    %v322 = vld [vmem:[#allocation5 + $0x718] sm:$0xff]
    %v323 = vld [vmem:[#allocation5 + $0x720] sm:$0xff]
    %v324 = vld [vmem:[#allocation5 + $0x728] sm:$0xff]
    %v325 = vld [vmem:[#allocation5 + $0x730] sm:$0xff]
    %v326 = vld [vmem:[#allocation5 + $0x738] sm:$0xff]
    %v327 = vld [vmem:[#allocation5 + $0x740] sm:$0xff]
    %v328 = vld [vmem:[#allocation5 + $0x748] sm:$0xff]
    %v329 = vld [vmem:[#allocation5 + $0x750] sm:$0xff]
    %v330 = vld [vmem:[#allocation5 + $0x758] sm:$0xff]
    %v331 = vld [vmem:[#allocation5 + $0x760] sm:$0xff]
    %v332 = vld [vmem:[#allocation5 + $0x768] sm:$0xff]
    %v333 = vld [vmem:[#allocation5 + $0x770] sm:$0xff]
    %v334 = vld [vmem:[#allocation5 + $0x778] sm:$0xff]
    %v335 = vld [vmem:[#allocation5 + $0x780] sm:$0xff]
    %v336 = vld [vmem:[#allocation5 + $0x788] sm:$0xff]
    %v337 = vld [vmem:[#allocation5 + $0x790] sm:$0xff]
    %v338 = vld [vmem:[#allocation5 + $0x798] sm:$0xff]
    %v339 = vld [vmem:[#allocation5 + $0x7a0] sm:$0xff]
    %v340 = vld [vmem:[#allocation5 + $0x7a8] sm:$0xff]
    %v341 = vld [vmem:[#allocation5 + $0x7b0] sm:$0xff]
    %v342 = vld [vmem:[#allocation5 + $0x7b8] sm:$0xff]
    %v343 = vld [vmem:[#allocation5 + $0x7c0] sm:$0xff]
    %v344 = vld [vmem:[#allocation5 + $0x7c8] sm:$0xff]
    %v345 = vld [vmem:[#allocation5 + $0x7d0] sm:$0xff]
    %v346 = vld [vmem:[#allocation5 + $0x7d8] sm:$0xff]
    %v347 = vld [vmem:[#allocation5 + $0x7e0] sm:$0xff]
    %v348 = vld [vmem:[#allocation5 + $0x7e8] sm:$0xff]
    %v349 = vld [vmem:[#allocation5 + $0x7f0] sm:$0xff]
    %v350 = vld [vmem:[#allocation5 + $0x7f8] sm:$0xff]
    %v351 = vld [vmem:[#allocation5 + $0x800] sm:$0xff]
    %v352 = vld [vmem:[#allocation5 + $0x808] sm:$0xff]
    %v353 = vld [vmem:[#allocation5 + $0x810] sm:$0xff]
    %v354 = vld [vmem:[#allocation5 + $0x818] sm:$0xff]
    %v355 = vld [vmem:[#allocation5 + $0x820] sm:$0xff]
    %v356 = vld [vmem:[#allocation5 + $0x828] sm:$0xff]
    %v357 = vld [vmem:[#allocation5 + $0x830] sm:$0xff]
    %v358 = vld [vmem:[#allocation5 + $0x838] sm:$0xff]
    %v359 = vld [vmem:[#allocation5 + $0x840] sm:$0xff]
    %v360 = vld [vmem:[#allocation5 + $0x848] sm:$0xff]
    %v361 = vld [vmem:[#allocation5 + $0x850] sm:$0xff]
    %v362 = vld [vmem:[#allocation5 + $0x858] sm:$0xff]
    %v363 = vld [vmem:[#allocation5 + $0x860] sm:$0xff]
    %v364 = vld [vmem:[#allocation5 + $0x868] sm:$0xff]
    %v365 = vld [vmem:[#allocation5 + $0x870] sm:$0xff]
    %v366 = vld [vmem:[#allocation5 + $0x878] sm:$0xff]
    %v367 = vld [vmem:[#allocation5 + $0x880] sm:$0xff]
    %v368 = vld [vmem:[#allocation5 + $0x888] sm:$0xff]
    %v369 = vld [vmem:[#allocation5 + $0x890] sm:$0xff]
    %v370 = vld [vmem:[#allocation5 + $0x898] sm:$0xff]
    %v371 = vld [vmem:[#allocation5 + $0x8a0] sm:$0xff]
    %v372 = vld [vmem:[#allocation5 + $0x8a8] sm:$0xff]
    %v373 = vld [vmem:[#allocation5 + $0x8b0] sm:$0xff]
    %v374 = vld [vmem:[#allocation5 + $0x8b8] sm:$0xff]
    %v375 = vld [vmem:[#allocation5 + $0x8c0] sm:$0xff]
    %v376 = vld [vmem:[#allocation5 + $0x8c8] sm:$0xff]
    %v377 = vld [vmem:[#allocation5 + $0x8d0] sm:$0xff]
    %v378 = vld [vmem:[#allocation5 + $0x8d8] sm:$0xff]
    %v379 = vld [vmem:[#allocation5 + $0x8e0] sm:$0xff]
    %v380 = vld [vmem:[#allocation5 + $0x8e8] sm:$0xff]
    %v381 = vld [vmem:[#allocation5 + $0x8f0] sm:$0xff]
    %v382 = vld [vmem:[#allocation5 + $0x8f8] sm:$0xff]
    %v383 = vld [vmem:[#allocation5 + $0x900] sm:$0xff]
    %v384 = vld [vmem:[#allocation5 + $0x908] sm:$0xff]
    %v385 = vld [vmem:[#allocation5 + $0x910] sm:$0xff]
    %v386 = vld [vmem:[#allocation5 + $0x918] sm:$0xff]
    %v387 = vld [vmem:[#allocation5 + $0x920] sm:$0xff]
    %v388 = vld [vmem:[#allocation5 + $0x928] sm:$0xff]
    %v389 = vld [vmem:[#allocation5 + $0x930] sm:$0xff]
    %v390 = vld [vmem:[#allocation5 + $0x938] sm:$0xff]
    %v391 = vld [vmem:[#allocation5 + $0x940] sm:$0xff]
    %v392 = vld [vmem:[#allocation5 + $0x948] sm:$0xff]
    %v393 = vld [vmem:[#allocation5 + $0x950] sm:$0xff]
    %v394 = vld [vmem:[#allocation5 + $0x958] sm:$0xff]
    %v395 = vld [vmem:[#allocation5 + $0x960] sm:$0xff]
    %v396 = vld [vmem:[#allocation5 + $0x968] sm:$0xff]
    %v397 = vld [vmem:[#allocation5 + $0x970] sm:$0xff]
    %v398 = vld [vmem:[#allocation5 + $0x978] sm:$0xff]
    %v399 = vld [vmem:[#allocation5 + $0x980] sm:$0xff]
    %v400 = vld [vmem:[#allocation5 + $0x988] sm:$0xff]
    %v401 = vld [vmem:[#allocation5 + $0x990] sm:$0xff]
    %v402 = vld [vmem:[#allocation5 + $0x998] sm:$0xff]
    %v403 = vld [vmem:[#allocation5 + $0x9a0] sm:$0xff]
    %v404 = vld [vmem:[#allocation5 + $0x9a8] sm:$0xff]
    %v405 = vld [vmem:[#allocation5 + $0x9b0] sm:$0xff]
    %v406 = vld [vmem:[#allocation5 + $0x9b8] sm:$0xff]
    %v407 = vld [vmem:[#allocation5 + $0x9c0] sm:$0xff]
    %v408 = vld [vmem:[#allocation5 + $0x9c8] sm:$0xff]
    %v409 = vld [vmem:[#allocation5 + $0x9d0] sm:$0xff]
    %v410 = vld [vmem:[#allocation5 + $0x9d8] sm:$0xff]
    %v411 = vld [vmem:[#allocation5 + $0x9e0] sm:$0xff]
    %v412 = vld [vmem:[#allocation5 + $0x9e8] sm:$0xff]
    %v413 = vld [vmem:[#allocation5 + $0x9f0] sm:$0xff]
    %v414 = vld [vmem:[#allocation5 + $0x9f8] sm:$0xff]
    %v415 = vld [vmem:[#allocation5 + $0xa00] sm:$0xff]
    %v416 = vld [vmem:[#allocation5 + $0xa08] sm:$0xff]
    %v417 = vld [vmem:[#allocation5 + $0xa10] sm:$0xff]
    %v418 = vld [vmem:[#allocation5 + $0xa18] sm:$0xff]
    %v419 = vld [vmem:[#allocation5 + $0xa20] sm:$0xff]
    %v420 = vld [vmem:[#allocation5 + $0xa28] sm:$0xff]
    %v421 = vld [vmem:[#allocation5 + $0xa30] sm:$0xff]
    %v422 = vld [vmem:[#allocation5 + $0xa38] sm:$0xff]
    %v423 = vld [vmem:[#allocation5 + $0xa40] sm:$0xff]
    %v424 = vld [vmem:[#allocation5 + $0xa48] sm:$0xff]
    %v425 = vld [vmem:[#allocation5 + $0xa50] sm:$0xff]
    %v426 = vld [vmem:[#allocation5 + $0xa58] sm:$0xff]
    %v427 = vld [vmem:[#allocation5 + $0xa60] sm:$0xff]
    %v428 = vld [vmem:[#allocation5 + $0xa68] sm:$0xff]
    %v429 = vld [vmem:[#allocation5 + $0xa70] sm:$0xff]
    %v430 = vld [vmem:[#allocation5 + $0xa78] sm:$0xff]
    %v431 = vld [vmem:[#allocation5 + $0xa80] sm:$0xff]
    %v432 = vld [vmem:[#allocation5 + $0xa88] sm:$0xff]
    %v433 = vld [vmem:[#allocation5 + $0xa90] sm:$0xff]
    %v434 = vld [vmem:[#allocation5 + $0xa98] sm:$0xff]
    %v435 = vld [vmem:[#allocation5 + $0xaa0] sm:$0xff]
    %v436 = vld [vmem:[#allocation5 + $0xaa8] sm:$0xff]
    %v437 = vld [vmem:[#allocation5 + $0xab0] sm:$0xff]
    %v438 = vld [vmem:[#allocation5 + $0xab8] sm:$0xff]
    %v439 = vld [vmem:[#allocation5 + $0xac0] sm:$0xff]
    %v440 = vld [vmem:[#allocation5 + $0xac8] sm:$0xff]
    %v441 = vld [vmem:[#allocation5 + $0xad0] sm:$0xff]
    %v442 = vld [vmem:[#allocation5 + $0xad8] sm:$0xff]
    %v443 = vld [vmem:[#allocation5 + $0xae0] sm:$0xff]
    %v444 = vld [vmem:[#allocation5 + $0xae8] sm:$0xff]
    %v445 = vld [vmem:[#allocation5 + $0xaf0] sm:$0xff]
    %v446 = vld [vmem:[#allocation5 + $0xaf8] sm:$0xff]
    %v447 = vld [vmem:[#allocation7] sm:$0xf]
    %v449 = vperm.slane %v447, 0
    %v450 = vperm.slane %v447, 1
    %v451 = vperm.slane %v447, 2
    %v452 = vperm.slane %v447, 3
    %458 = vst [vmem:[#allocation1] ss:$9 sm:$0xff] %v93
    %v459 = vld [vmem:[#allocation1] sm:$0xff]
    %v460 = vld [vmem:[#allocation1 + $0x9] sm:$0xff]
    %v461 = vld [vmem:[#allocation1 + $0x12] sm:$0xff]
    %v462 = vld [vmem:[#allocation1 + $0x1b] sm:$0xff]
    %v463 = vld [vmem:[#allocation1 + $0x24] sm:$0xff]
    %v464 = vld [vmem:[#allocation1 + $0x2d] sm:$0xff]
    %v465 = vld [vmem:[#allocation1 + $0x36] sm:$0xff]
    %v466 = vld [vmem:[#allocation1 + $0x3f] sm:$0xff]
    %468 = vst [vmem:[#allocation1] ss:$9 sm:$0xff] %v94
    %v469 = vld [vmem:[#allocation1] sm:$0xff]
    %v470 = vld [vmem:[#allocation1 + $0x9] sm:$0xff]
    %v471 = vld [vmem:[#allocation1 + $0x12] sm:$0xff]
    %v835 = vunpack.c.l.b16 %v95
    %v836 = vunpack.c.h.b16 %v95
    %v837 = vunpack.c.l.b16 %v96
    %v838 = vunpack.c.h.b16 %v96
    %v839 = vunpack.c.l.b16 %v97
    %v840 = vunpack.c.h.b16 %v97
    %v841 = vunpack.c.l.b16 %v98
    %v842 = vunpack.c.h.b16 %v98
    %v843 = vunpack.c.l.b16 %v99
    %v844 = vunpack.c.h.b16 %v99
    %v845 = vunpack.c.l.b16 %v100
    %v846 = vunpack.c.h.b16 %v100
    %v847 = vunpack.c.l.b16 %v101
    %v848 = vunpack.c.h.b16 %v101
    %v849 = vunpack.c.l.b16 %v102
    %v850 = vunpack.c.h.b16 %v102
    %v851 = vunpack.c.l.b16 %v103
    %v852 = vunpack.c.h.b16 %v103
    %v853 = vunpack.c.l.b16 %v104
    %v854 = vunpack.c.h.b16 %v104
    %v855 = vunpack.c.l.b16 %v105
    %v856 = vunpack.c.h.b16 %v105
    %v857 = vunpack.c.l.b16 %v106
    %v858 = vunpack.c.h.b16 %v106
    %v859 = vunpack.c.l.b16 %v107
    %v860 = vunpack.c.h.b16 %v107
    %v861 = vunpack.c.l.b16 %v108
    %v862 = vunpack.c.h.b16 %v108
    %v863 = vunpack.c.l.b16 %v109
    %v864 = vunpack.c.h.b16 %v109
    %v865 = vunpack.c.l.b16 %v110
    %v866 = vunpack.c.h.b16 %v110
    %v867 = vunpack.c.l.b16 %v111
    %v868 = vunpack.c.h.b16 %v111
    %v869 = vunpack.c.l.b16 %v112
    %v870 = vunpack.c.h.b16 %v112
    %v871 = vunpack.c.l.b16 %v113
    %v872 = vunpack.c.h.b16 %v113
    %v873 = vunpack.c.l.b16 %v114
    %v874 = vunpack.c.h.b16 %v114
    %v875 = vunpack.c.l.b16 %v115
    %v876 = vunpack.c.h.b16 %v115
    %v877 = vunpack.c.l.b16 %v116
    %v878 = vunpack.c.h.b16 %v116
    %v879 = vunpack.c.l.b16 %v117
    %v880 = vunpack.c.h.b16 %v117
    %v881 = vunpack.c.l.b16 %v118
    %v882 = vunpack.c.h.b16 %v118
    %v883 = vunpack.c.l.b16 %v119
    %v884 = vunpack.c.h.b16 %v119
    %v885 = vunpack.c.l.b16 %v120
    %v886 = vunpack.c.h.b16 %v120
    %v887 = vunpack.c.l.b16 %v121
    %v888 = vunpack.c.h.b16 %v121
    %v889 = vunpack.c.l.b16 %v122
    %v890 = vunpack.c.h.b16 %v122
    %v891 = vunpack.c.l.b16 %v123
    %v892 = vunpack.c.h.b16 %v123
    %v893 = vunpack.c.l.b16 %v124
    %v894 = vunpack.c.h.b16 %v124
    %v895 = vunpack.c.l.b16 %v125
    %v896 = vunpack.c.h.b16 %v125
    %v897 = vunpack.c.l.b16 %v126
    %v898 = vunpack.c.h.b16 %v126
    %v899 = vunpack.c.l.b16 %v127
    %v900 = vunpack.c.h.b16 %v127
    %v901 = vunpack.c.l.b16 %v128
    %v902 = vunpack.c.h.b16 %v128
    %v903 = vunpack.c.l.b16 %v129
    %v904 = vunpack.c.h.b16 %v129
    %v905 = vunpack.c.l.b16 %v130
    %v906 = vunpack.c.h.b16 %v130
    %v907 = vunpack.c.l.b16 %v131
    %v908 = vunpack.c.h.b16 %v131
    %v909 = vunpack.c.l.b16 %v132
    %v910 = vunpack.c.h.b16 %v132
    %v911 = vunpack.c.l.b16 %v133
    %v912 = vunpack.c.h.b16 %v133
    %v913 = vunpack.c.l.b16 %v134
    %v914 = vunpack.c.h.b16 %v134
    %v915 = vunpack.c.l.b16 %v135
    %v916 = vunpack.c.h.b16 %v135
    %v917 = vunpack.c.l.b16 %v136
    %v918 = vunpack.c.h.b16 %v136
    %v919 = vunpack.c.l.b16 %v137
    %v920 = vunpack.c.h.b16 %v137
    %v921 = vunpack.c.l.b16 %v138
    %v922 = vunpack.c.h.b16 %v138
    %v923 = vunpack.c.l.b16 %v139
    %v924 = vunpack.c.h.b16 %v139
    %v925 = vunpack.c.l.b16 %v140
    %v926 = vunpack.c.h.b16 %v140
    %v927 = vunpack.c.l.b16 %v141
    %v928 = vunpack.c.h.b16 %v141
    %v929 = vunpack.c.l.b16 %v142
    %v930 = vunpack.c.h.b16 %v142
    %v931 = vunpack.c.l.b16 %v143
    %v932 = vunpack.c.h.b16 %v143
    %v933 = vunpack.c.l.b16 %v144
    %v934 = vunpack.c.h.b16 %v144
    %v935 = vunpack.c.l.b16 %v145
    %v936 = vunpack.c.h.b16 %v145
    %v937 = vunpack.c.l.b16 %v146
    %v938 = vunpack.c.h.b16 %v146
    %v939 = vunpack.c.l.b16 %v147
    %v940 = vunpack.c.h.b16 %v147
    %v941 = vunpack.c.l.b16 %v148
    %v942 = vunpack.c.h.b16 %v148
    %v943 = vunpack.c.l.b16 %v149
    %v944 = vunpack.c.h.b16 %v149
    %v945 = vunpack.c.l.b16 %v150
    %v946 = vunpack.c.h.b16 %v150
    %v947 = vunpack.c.l.b16 %v151
    %v948 = vunpack.c.h.b16 %v151
    %v949 = vunpack.c.l.b16 %v152
    %v950 = vunpack.c.h.b16 %v152
    %v951 = vunpack.c.l.b16 %v153
    %v952 = vunpack.c.h.b16 %v153
    %v953 = vunpack.c.l.b16 %v154
    %v954 = vunpack.c.h.b16 %v154
    %v955 = vunpack.c.l.b16 %v155
    %v956 = vunpack.c.h.b16 %v155
    %v957 = vunpack.c.l.b16 %v156
    %v958 = vunpack.c.h.b16 %v156
    %v959 = vunpack.c.l.b16 %v157
    %v960 = vunpack.c.h.b16 %v157
    %v961 = vunpack.c.l.b16 %v158
    %v962 = vunpack.c.h.b16 %v158
    %v963 = vunpack.c.l.b16 %v159
    %v964 = vunpack.c.h.b16 %v159
    %v965 = vunpack.c.l.b16 %v160
    %v966 = vunpack.c.h.b16 %v160
    %v967 = vunpack.c.l.b16 %v161
    %v968 = vunpack.c.h.b16 %v161
    %v969 = vunpack.c.l.b16 %v162
    %v970 = vunpack.c.h.b16 %v162
    %v971 = vunpack.c.l.b16 %v163
    %v972 = vunpack.c.h.b16 %v163
    %v973 = vunpack.c.l.b16 %v164
    %v974 = vunpack.c.h.b16 %v164
    %v975 = vunpack.c.l.b16 %v165
    %v976 = vunpack.c.h.b16 %v165
    %v977 = vunpack.c.l.b16 %v166
    %v978 = vunpack.c.h.b16 %v166
    %v979 = vunpack.c.l.b16 %v167
    %v980 = vunpack.c.h.b16 %v167
    %v981 = vunpack.c.l.b16 %v168
    %v982 = vunpack.c.h.b16 %v168
    %v983 = vunpack.c.l.b16 %v169
    %v984 = vunpack.c.h.b16 %v169
    %v985 = vunpack.c.l.b16 %v170
    %v986 = vunpack.c.h.b16 %v170
    %v987 = vunpack.c.l.b16 %v171
    %v988 = vunpack.c.h.b16 %v171
    %v989 = vunpack.c.l.b16 %v172
    %v990 = vunpack.c.h.b16 %v172
    %v991 = vunpack.c.l.b16 %v173
    %v992 = vunpack.c.h.b16 %v173
    %v993 = vunpack.c.l.b16 %v174
    %v994 = vunpack.c.h.b16 %v174
    %v995 = vunpack.c.l.b16 %v175
    %v996 = vunpack.c.h.b16 %v175
    %v997 = vunpack.c.l.b16 %v176
    %v998 = vunpack.c.h.b16 %v176
    %v999 = vunpack.c.l.b16 %v177
    %v1000 = vunpack.c.h.b16 %v177
    %v1001 = vunpack.c.l.b16 %v178
    %v1002 = vunpack.c.h.b16 %v178
    %v1003 = vunpack.c.l.b16 %v179
    %v1004 = vunpack.c.h.b16 %v179
    %v1005 = vunpack.c.l.b16 %v180
    %v1006 = vunpack.c.h.b16 %v180
    %v1007 = vunpack.c.l.b16 %v181
    %v1008 = vunpack.c.h.b16 %v181
    %v1009 = vunpack.c.l.b16 %v182
    %v1010 = vunpack.c.h.b16 %v182
    %v1011 = vunpack.c.l.b16 %v183
    %v1012 = vunpack.c.h.b16 %v183
    %v1013 = vunpack.c.l.b16 %v184
    %v1014 = vunpack.c.h.b16 %v184
    %v1015 = vunpack.c.l.b16 %v185
    %v1016 = vunpack.c.h.b16 %v185
    %v1017 = vunpack.c.l.b16 %v186
    %v1018 = vunpack.c.h.b16 %v186
    %v1019 = vunpack.c.l.b16 %v187
    %v1020 = vunpack.c.h.b16 %v187
    %v1021 = vunpack.c.l.b16 %v188
    %v1022 = vunpack.c.h.b16 %v188
    %v1023 = vunpack.c.l.b16 %v189
    %v1024 = vunpack.c.h.b16 %v189
    %v1025 = vunpack.c.l.b16 %v190
    %v1026 = vunpack.c.h.b16 %v190
    %v1027 = vunpack.c.l.b16 %v191
    %v1028 = vunpack.c.h.b16 %v191
    %v1029 = vunpack.c.l.b16 %v192
    %v1030 = vunpack.c.h.b16 %v192
    %v1031 = vunpack.c.l.b16 %v193
    %v1032 = vunpack.c.h.b16 %v193
    %v1033 = vunpack.c.l.b16 %v194
    %v1034 = vunpack.c.h.b16 %v194
    %v1035 = vunpack.c.l.b16 %v195
    %v1036 = vunpack.c.h.b16 %v195
    %v1037 = vunpack.c.l.b16 %v196
    %v1038 = vunpack.c.h.b16 %v196
    %v1039 = vunpack.c.l.b16 %v197
    %v1040 = vunpack.c.h.b16 %v197
    %v1041 = vunpack.c.l.b16 %v198
    %v1042 = vunpack.c.h.b16 %v198
    %v1043 = vunpack.c.l.b16 %v199
    %v1044 = vunpack.c.h.b16 %v199
    %v1045 = vunpack.c.l.b16 %v200
    %v1046 = vunpack.c.h.b16 %v200
    %v1047 = vunpack.c.l.b16 %v201
    %v1048 = vunpack.c.h.b16 %v201
    %v1049 = vunpack.c.l.b16 %v202
    %v1050 = vunpack.c.h.b16 %v202
    %v1051 = vunpack.c.l.b16 %v203
    %v1052 = vunpack.c.h.b16 %v203
    %v1053 = vunpack.c.l.b16 %v204
    %v1054 = vunpack.c.h.b16 %v204
    %v1055 = vunpack.c.l.b16 %v205
    %v1056 = vunpack.c.h.b16 %v205
    %v1057 = vunpack.c.l.b16 %v206
    %v1058 = vunpack.c.h.b16 %v206
    %v1059 = vunpack.c.l.b16 %v207
    %v1060 = vunpack.c.h.b16 %v207
    %v1061 = vunpack.c.l.b16 %v208
    %v1062 = vunpack.c.h.b16 %v208
    %v1063 = vunpack.c.l.b16 %v209
    %v1064 = vunpack.c.h.b16 %v209
    %v1065 = vunpack.c.l.b16 %v210
    %v1066 = vunpack.c.h.b16 %v210
    %v1067 = vunpack.c.l.b16 %v211
    %v1068 = vunpack.c.h.b16 %v211
    %v1069 = vunpack.c.l.b16 %v212
    %v1070 = vunpack.c.h.b16 %v212
    %v1071 = vunpack.c.l.b16 %v213
    %v1072 = vunpack.c.h.b16 %v213
    %v1073 = vunpack.c.l.b16 %v214
    %v1074 = vunpack.c.h.b16 %v214
    %v1075 = vunpack.c.l.b16 %v215
    %v1076 = vunpack.c.h.b16 %v215
    %v1077 = vunpack.c.l.b16 %v216
    %v1078 = vunpack.c.h.b16 %v216
    %v1079 = vunpack.c.l.b16 %v217
    %v1080 = vunpack.c.h.b16 %v217
    %v1081 = vunpack.c.l.b16 %v218
    %v1082 = vunpack.c.h.b16 %v218
    %v1083 = vunpack.c.l.b16 %v219
    %v1084 = vunpack.c.h.b16 %v219
    %v1085 = vunpack.c.l.b16 %v220
    %v1086 = vunpack.c.h.b16 %v220
    %v1087 = vunpack.c.l.b16 %v221
    %v1088 = vunpack.c.h.b16 %v221
    %v1089 = vunpack.c.l.b16 %v222
    %v1090 = vunpack.c.h.b16 %v222
    %v1091 = vunpack.c.l.b16 %v223
    %v1092 = vunpack.c.h.b16 %v223
    %v1093 = vunpack.c.l.b16 %v224
    %v1094 = vunpack.c.h.b16 %v224
    %v1095 = vunpack.c.l.b16 %v225
    %v1096 = vunpack.c.h.b16 %v225
    %v1097 = vunpack.c.l.b16 %v226
    %v1098 = vunpack.c.h.b16 %v226
    %v1099 = vunpack.c.l.b16 %v227
    %v1100 = vunpack.c.h.b16 %v227
    %v1101 = vunpack.c.l.b16 %v228
    %v1102 = vunpack.c.h.b16 %v228
    %v1103 = vunpack.c.l.b16 %v229
    %v1104 = vunpack.c.h.b16 %v229
    %v1105 = vunpack.c.l.b16 %v230
    %v1106 = vunpack.c.h.b16 %v230
    %v1107 = vunpack.c.l.b16 %v231
    %v1108 = vunpack.c.h.b16 %v231
    %v1109 = vunpack.c.l.b16 %v232
    %v1110 = vunpack.c.h.b16 %v232
    %v1111 = vunpack.c.l.b16 %v233
    %v1112 = vunpack.c.h.b16 %v233
    %v1113 = vunpack.c.l.b16 %v234
    %v1114 = vunpack.c.h.b16 %v234
    %v1115 = vunpack.c.l.b16 %v235
    %v1116 = vunpack.c.h.b16 %v235
    %v1117 = vunpack.c.l.b16 %v236
    %v1118 = vunpack.c.h.b16 %v236
    %v1119 = vunpack.c.l.b16 %v237
    %v1120 = vunpack.c.h.b16 %v237
    %v1121 = vunpack.c.l.b16 %v238
    %v1122 = vunpack.c.h.b16 %v238
    %v1123 = vunpack.c.l.b16 %v239
    %v1124 = vunpack.c.h.b16 %v239
    %v1125 = vunpack.c.l.b16 %v240
    %v1126 = vunpack.c.h.b16 %v240
    %v1127 = vunpack.c.l.b16 %v241
    %v1128 = vunpack.c.h.b16 %v241
    %v1129 = vunpack.c.l.b16 %v242
    %v1130 = vunpack.c.h.b16 %v242
    %v1131 = vunpack.c.l.b16 %v243
    %v1132 = vunpack.c.h.b16 %v243
    %v1133 = vunpack.c.l.b16 %v244
    %v1134 = vunpack.c.h.b16 %v244
    %v1135 = vunpack.c.l.b16 %v245
    %v1136 = vunpack.c.h.b16 %v245
    %v1137 = vunpack.c.l.b16 %v246
    %v1138 = vunpack.c.h.b16 %v246
    %v1139 = vunpack.c.l.b16 %v247
    %v1140 = vunpack.c.h.b16 %v247
    %v1141 = vunpack.c.l.b16 %v248
    %v1142 = vunpack.c.h.b16 %v248
    %v1143 = vunpack.c.l.b16 %v249
    %v1144 = vunpack.c.h.b16 %v249
    %v1145 = vunpack.c.l.b16 %v250
    %v1146 = vunpack.c.h.b16 %v250
    %v1147 = vunpack.c.l.b16 %v251
    %v1148 = vunpack.c.h.b16 %v251
    %v1149 = vunpack.c.l.b16 %v252
    %v1150 = vunpack.c.h.b16 %v252
    %v1151 = vunpack.c.l.b16 %v253
    %v1152 = vunpack.c.h.b16 %v253
    %v1153 = vunpack.c.l.b16 %v254
    %v1154 = vunpack.c.h.b16 %v254
    %v1155 = vunpack.c.l.b16 %v255
    %v1156 = vunpack.c.h.b16 %v255
    %v1157 = vunpack.c.l.b16 %v256
    %v1158 = vunpack.c.h.b16 %v256
    %v1159 = vunpack.c.l.b16 %v257
    %v1160 = vunpack.c.h.b16 %v257
    %v1161 = vunpack.c.l.b16 %v258
    %v1162 = vunpack.c.h.b16 %v258
    %v1163 = vunpack.c.l.b16 %v259
    %v1164 = vunpack.c.h.b16 %v259
    %v1165 = vunpack.c.l.b16 %v260
    %v1166 = vunpack.c.h.b16 %v260
    %v1167 = vunpack.c.l.b16 %v261
    %v1168 = vunpack.c.h.b16 %v261
    %v1169 = vunpack.c.l.b16 %v262
    %v1170 = vunpack.c.h.b16 %v262
    %v1171 = vunpack.c.l.b16 %v263
    %v1172 = vunpack.c.h.b16 %v263
    %v1173 = vunpack.c.l.b16 %v264
    %v1174 = vunpack.c.h.b16 %v264
    %v1175 = vunpack.c.l.b16 %v265
    %v1176 = vunpack.c.h.b16 %v265
    %v1177 = vunpack.c.l.b16 %v266
    %v1178 = vunpack.c.h.b16 %v266
    %v1179 = vunpack.c.l.b16 %v267
    %v1180 = vunpack.c.h.b16 %v267
    %v1181 = vunpack.c.l.b16 %v268
    %v1182 = vunpack.c.h.b16 %v268
    %v1183 = vunpack.c.l.b16 %v269
    %v1184 = vunpack.c.h.b16 %v269
    %v1185 = vunpack.c.l.b16 %v270
    %v1186 = vunpack.c.h.b16 %v270
    %v1187 = vunpack.c.l.b16 %v271
    %v1188 = vunpack.c.h.b16 %v271
    %v1189 = vunpack.c.l.b16 %v272
    %v1190 = vunpack.c.h.b16 %v272
    %v1191 = vunpack.c.l.b16 %v273
    %v1192 = vunpack.c.h.b16 %v273
    %v1193 = vunpack.c.l.b16 %v274
    %v1194 = vunpack.c.h.b16 %v274
    %v1195 = vunpack.c.l.b16 %v275
    %v1196 = vunpack.c.h.b16 %v275
    %v1197 = vunpack.c.l.b16 %v276
    %v1198 = vunpack.c.h.b16 %v276
    %v1199 = vunpack.c.l.b16 %v277
    %v1200 = vunpack.c.h.b16 %v277
    %v1201 = vunpack.c.l.b16 %v278
    %v1202 = vunpack.c.h.b16 %v278
    %v1203 = vunpack.c.l.b16 %v279
    %v1204 = vunpack.c.h.b16 %v279
    %v1205 = vunpack.c.l.b16 %v280
    %v1206 = vunpack.c.h.b16 %v280
    %v1207 = vunpack.c.l.b16 %v281
    %v1208 = vunpack.c.h.b16 %v281
    %v1209 = vunpack.c.l.b16 %v282
    %v1210 = vunpack.c.h.b16 %v282
    %v1211 = vunpack.c.l.b16 %v283
    %v1212 = vunpack.c.h.b16 %v283
    %v1213 = vunpack.c.l.b16 %v284
    %v1214 = vunpack.c.h.b16 %v284
    %v1215 = vunpack.c.l.b16 %v285
    %v1216 = vunpack.c.h.b16 %v285
    %v1217 = vunpack.c.l.b16 %v286
    %v1218 = vunpack.c.h.b16 %v286
    %v1219 = vunpack.c.l.b16 %v287
    %v1220 = vunpack.c.h.b16 %v287
    %v1221 = vunpack.c.l.b16 %v288
    %v1222 = vunpack.c.h.b16 %v288
    %v1223 = vunpack.c.l.b16 %v289
    %v1224 = vunpack.c.h.b16 %v289
    %v1225 = vunpack.c.l.b16 %v290
    %v1226 = vunpack.c.h.b16 %v290
    %v1227 = vunpack.c.l.b16 %v291
    %v1228 = vunpack.c.h.b16 %v291
    %v1229 = vunpack.c.l.b16 %v292
    %v1230 = vunpack.c.h.b16 %v292
    %v1231 = vunpack.c.l.b16 %v293
    %v1232 = vunpack.c.h.b16 %v293
    %v1233 = vunpack.c.l.b16 %v294
    %v1234 = vunpack.c.h.b16 %v294
    %v1235 = vunpack.c.l.b16 %v295
    %v1236 = vunpack.c.h.b16 %v295
    %v1237 = vunpack.c.l.b16 %v296
    %v1238 = vunpack.c.h.b16 %v296
    %v1239 = vunpack.c.l.b16 %v297
    %v1240 = vunpack.c.h.b16 %v297
    %v1241 = vunpack.c.l.b16 %v298
    %v1242 = vunpack.c.h.b16 %v298
    %v1243 = vunpack.c.l.b16 %v299
    %v1244 = vunpack.c.h.b16 %v299
    %v1245 = vunpack.c.l.b16 %v300
    %v1246 = vunpack.c.h.b16 %v300
    %v1247 = vunpack.c.l.b16 %v301
    %v1248 = vunpack.c.h.b16 %v301
    %v1249 = vunpack.c.l.b16 %v302
    %v1250 = vunpack.c.h.b16 %v302
    %v1251 = vunpack.c.l.b16 %v303
    %v1252 = vunpack.c.h.b16 %v303
    %v1253 = vunpack.c.l.b16 %v304
    %v1254 = vunpack.c.h.b16 %v304
    %v1255 = vunpack.c.l.b16 %v305
    %v1256 = vunpack.c.h.b16 %v305
    %v1257 = vunpack.c.l.b16 %v306
    %v1258 = vunpack.c.h.b16 %v306
    %v1259 = vunpack.c.l.b16 %v307
    %v1260 = vunpack.c.h.b16 %v307
    %v1261 = vunpack.c.l.b16 %v308
    %v1262 = vunpack.c.h.b16 %v308
    %v1263 = vunpack.c.l.b16 %v309
    %v1264 = vunpack.c.h.b16 %v309
    %v1265 = vunpack.c.l.b16 %v310
    %v1266 = vunpack.c.h.b16 %v310
    %v1267 = vunpack.c.l.b16 %v311
    %v1268 = vunpack.c.h.b16 %v311
    %v1269 = vunpack.c.l.b16 %v312
    %v1270 = vunpack.c.h.b16 %v312
    %v1271 = vunpack.c.l.b16 %v313
    %v1272 = vunpack.c.h.b16 %v313
    %v1273 = vunpack.c.l.b16 %v314
    %v1274 = vunpack.c.h.b16 %v314
    %v1275 = vunpack.c.l.b16 %v315
    %v1276 = vunpack.c.h.b16 %v315
    %v1277 = vunpack.c.l.b16 %v316
    %v1278 = vunpack.c.h.b16 %v316
    %v1279 = vunpack.c.l.b16 %v317
    %v1280 = vunpack.c.h.b16 %v317
    %v1281 = vunpack.c.l.b16 %v318
    %v1282 = vunpack.c.h.b16 %v318
    %v1283 = vunpack.c.l.b16 %v319
    %v1284 = vunpack.c.h.b16 %v319
    %v1285 = vunpack.c.l.b16 %v320
    %v1286 = vunpack.c.h.b16 %v320
    %v1287 = vunpack.c.l.b16 %v321
    %v1288 = vunpack.c.h.b16 %v321
    %v1289 = vunpack.c.l.b16 %v322
    %v1290 = vunpack.c.h.b16 %v322
    %v1291 = vunpack.c.l.b16 %v323
    %v1292 = vunpack.c.h.b16 %v323
    %v1293 = vunpack.c.l.b16 %v324
    %v1294 = vunpack.c.h.b16 %v324
    %v1295 = vunpack.c.l.b16 %v325
    %v1296 = vunpack.c.h.b16 %v325
    %v1297 = vunpack.c.l.b16 %v326
    %v1298 = vunpack.c.h.b16 %v326
    %v1299 = vunpack.c.l.b16 %v327
    %v1300 = vunpack.c.h.b16 %v327
    %v1301 = vunpack.c.l.b16 %v328
    %v1302 = vunpack.c.h.b16 %v328
    %v1303 = vunpack.c.l.b16 %v329
    %v1304 = vunpack.c.h.b16 %v329
    %v1305 = vunpack.c.l.b16 %v330
    %v1306 = vunpack.c.h.b16 %v330
    %v1307 = vunpack.c.l.b16 %v331
    %v1308 = vunpack.c.h.b16 %v331
    %v1309 = vunpack.c.l.b16 %v332
    %v1310 = vunpack.c.h.b16 %v332
    %v1311 = vunpack.c.l.b16 %v333
    %v1312 = vunpack.c.h.b16 %v333
    %v1313 = vunpack.c.l.b16 %v334
    %v1314 = vunpack.c.h.b16 %v334
    %v1315 = vunpack.c.l.b16 %v335
    %v1316 = vunpack.c.h.b16 %v335
    %v1317 = vunpack.c.l.b16 %v336
    %v1318 = vunpack.c.h.b16 %v336
    %v1319 = vunpack.c.l.b16 %v337
    %v1320 = vunpack.c.h.b16 %v337
    %v1321 = vunpack.c.l.b16 %v338
    %v1322 = vunpack.c.h.b16 %v338
    %v1323 = vunpack.c.l.b16 %v339
    %v1324 = vunpack.c.h.b16 %v339
    %v1325 = vunpack.c.l.b16 %v340
    %v1326 = vunpack.c.h.b16 %v340
    %v1327 = vunpack.c.l.b16 %v341
    %v1328 = vunpack.c.h.b16 %v341
    %v1329 = vunpack.c.l.b16 %v342
    %v1330 = vunpack.c.h.b16 %v342
    %v1331 = vunpack.c.l.b16 %v343
    %v1332 = vunpack.c.h.b16 %v343
    %v1333 = vunpack.c.l.b16 %v344
    %v1334 = vunpack.c.h.b16 %v344
    %v1335 = vunpack.c.l.b16 %v345
    %v1336 = vunpack.c.h.b16 %v345
    %v1337 = vunpack.c.l.b16 %v346
    %v1338 = vunpack.c.h.b16 %v346
    %v1339 = vunpack.c.l.b16 %v347
    %v1340 = vunpack.c.h.b16 %v347
    %v1341 = vunpack.c.l.b16 %v348
    %v1342 = vunpack.c.h.b16 %v348
    %v1343 = vunpack.c.l.b16 %v349
    %v1344 = vunpack.c.h.b16 %v349
    %v1345 = vunpack.c.l.b16 %v350
    %v1346 = vunpack.c.h.b16 %v350
    %v1347 = vunpack.c.l.b16 %v351
    %v1348 = vunpack.c.h.b16 %v351
    %v1349 = vunpack.c.l.b16 %v352
    %v1350 = vunpack.c.h.b16 %v352
    %v1351 = vunpack.c.l.b16 %v353
    %v1352 = vunpack.c.h.b16 %v353
    %v1353 = vunpack.c.l.b16 %v354
    %v1354 = vunpack.c.h.b16 %v354
    %v1355 = vunpack.c.l.b16 %v355
    %v1356 = vunpack.c.h.b16 %v355
    %v1357 = vunpack.c.l.b16 %v356
    %v1358 = vunpack.c.h.b16 %v356
    %v1359 = vunpack.c.l.b16 %v357
    %v1360 = vunpack.c.h.b16 %v357
    %v1361 = vunpack.c.l.b16 %v358
    %v1362 = vunpack.c.h.b16 %v358
    %v1363 = vunpack.c.l.b16 %v359
    %v1364 = vunpack.c.h.b16 %v359
    %v1365 = vunpack.c.l.b16 %v360
    %v1366 = vunpack.c.h.b16 %v360
    %v1367 = vunpack.c.l.b16 %v361
    %v1368 = vunpack.c.h.b16 %v361
    %v1369 = vunpack.c.l.b16 %v362
    %v1370 = vunpack.c.h.b16 %v362
    %v1371 = vunpack.c.l.b16 %v363
    %v1372 = vunpack.c.h.b16 %v363
    %v1373 = vunpack.c.l.b16 %v364
    %v1374 = vunpack.c.h.b16 %v364
    %v1375 = vunpack.c.l.b16 %v365
    %v1376 = vunpack.c.h.b16 %v365
    %v1377 = vunpack.c.l.b16 %v366
    %v1378 = vunpack.c.h.b16 %v366
    %v1379 = vunpack.c.l.b16 %v367
    %v1380 = vunpack.c.h.b16 %v367
    %v1381 = vunpack.c.l.b16 %v368
    %v1382 = vunpack.c.h.b16 %v368
    %v1383 = vunpack.c.l.b16 %v369
    %v1384 = vunpack.c.h.b16 %v369
    %v1385 = vunpack.c.l.b16 %v370
    %v1386 = vunpack.c.h.b16 %v370
    %v1387 = vunpack.c.l.b16 %v371
    %v1388 = vunpack.c.h.b16 %v371
    %v1389 = vunpack.c.l.b16 %v372
    %v1390 = vunpack.c.h.b16 %v372
    %v1391 = vunpack.c.l.b16 %v373
    %v1392 = vunpack.c.h.b16 %v373
    %v1393 = vunpack.c.l.b16 %v374
    %v1394 = vunpack.c.h.b16 %v374
    %v1395 = vunpack.c.l.b16 %v375
    %v1396 = vunpack.c.h.b16 %v375
    %v1397 = vunpack.c.l.b16 %v376
    %v1398 = vunpack.c.h.b16 %v376
    %v1399 = vunpack.c.l.b16 %v377
    %v1400 = vunpack.c.h.b16 %v377
    %v1401 = vunpack.c.l.b16 %v378
    %v1402 = vunpack.c.h.b16 %v378
    %v1403 = vunpack.c.l.b16 %v379
    %v1404 = vunpack.c.h.b16 %v379
    %v1405 = vunpack.c.l.b16 %v380
    %v1406 = vunpack.c.h.b16 %v380
    %v1407 = vunpack.c.l.b16 %v381
    %v1408 = vunpack.c.h.b16 %v381
    %v1409 = vunpack.c.l.b16 %v382
    %v1410 = vunpack.c.h.b16 %v382
    %v1411 = vunpack.c.l.b16 %v383
    %v1412 = vunpack.c.h.b16 %v383
    %v1413 = vunpack.c.l.b16 %v384
    %v1414 = vunpack.c.h.b16 %v384
    %v1415 = vunpack.c.l.b16 %v385
    %v1416 = vunpack.c.h.b16 %v385
    %v1417 = vunpack.c.l.b16 %v386
    %v1418 = vunpack.c.h.b16 %v386
    %v1419 = vunpack.c.l.b16 %v387
    %v1420 = vunpack.c.h.b16 %v387
    %v1421 = vunpack.c.l.b16 %v388
    %v1422 = vunpack.c.h.b16 %v388
    %v1423 = vunpack.c.l.b16 %v389
    %v1424 = vunpack.c.h.b16 %v389
    %v1425 = vunpack.c.l.b16 %v390
    %v1426 = vunpack.c.h.b16 %v390
    %v1427 = vunpack.c.l.b16 %v391
    %v1428 = vunpack.c.h.b16 %v391
    %v1429 = vunpack.c.l.b16 %v392
    %v1430 = vunpack.c.h.b16 %v392
    %v1431 = vunpack.c.l.b16 %v393
    %v1432 = vunpack.c.h.b16 %v393
    %v1433 = vunpack.c.l.b16 %v394
    %v1434 = vunpack.c.h.b16 %v394
    %v1435 = vunpack.c.l.b16 %v395
    %v1436 = vunpack.c.h.b16 %v395
    %v1437 = vunpack.c.l.b16 %v396
    %v1438 = vunpack.c.h.b16 %v396
    %v1439 = vunpack.c.l.b16 %v397
    %v1440 = vunpack.c.h.b16 %v397
    %v1441 = vunpack.c.l.b16 %v398
    %v1442 = vunpack.c.h.b16 %v398
    %v1443 = vunpack.c.l.b16 %v399
    %v1444 = vunpack.c.h.b16 %v399
    %v1445 = vunpack.c.l.b16 %v400
    %v1446 = vunpack.c.h.b16 %v400
    %v1447 = vunpack.c.l.b16 %v401
    %v1448 = vunpack.c.h.b16 %v401
    %v1449 = vunpack.c.l.b16 %v402
    %v1450 = vunpack.c.h.b16 %v402
    %v1451 = vunpack.c.l.b16 %v403
    %v1452 = vunpack.c.h.b16 %v403
    %v1453 = vunpack.c.l.b16 %v404
    %v1454 = vunpack.c.h.b16 %v404
    %v1455 = vunpack.c.l.b16 %v405
    %v1456 = vunpack.c.h.b16 %v405
    %v1457 = vunpack.c.l.b16 %v406
    %v1458 = vunpack.c.h.b16 %v406
    %v1459 = vunpack.c.l.b16 %v407
    %v1460 = vunpack.c.h.b16 %v407
    %v1461 = vunpack.c.l.b16 %v408
    %v1462 = vunpack.c.h.b16 %v408
    %v1463 = vunpack.c.l.b16 %v409
    %v1464 = vunpack.c.h.b16 %v409
    %v1465 = vunpack.c.l.b16 %v410
    %v1466 = vunpack.c.h.b16 %v410
    %v1467 = vunpack.c.l.b16 %v411
    %v1468 = vunpack.c.h.b16 %v411
    %v1469 = vunpack.c.l.b16 %v412
    %v1470 = vunpack.c.h.b16 %v412
    %v1471 = vunpack.c.l.b16 %v413
    %v1472 = vunpack.c.h.b16 %v413
    %v1473 = vunpack.c.l.b16 %v414
    %v1474 = vunpack.c.h.b16 %v414
    %v1475 = vunpack.c.l.b16 %v415
    %v1476 = vunpack.c.h.b16 %v415
    %v1477 = vunpack.c.l.b16 %v416
    %v1478 = vunpack.c.h.b16 %v416
    %v1479 = vunpack.c.l.b16 %v417
    %v1480 = vunpack.c.h.b16 %v417
    %v1481 = vunpack.c.l.b16 %v418
    %v1482 = vunpack.c.h.b16 %v418
    %v1483 = vunpack.c.l.b16 %v419
    %v1484 = vunpack.c.h.b16 %v419
    %v1485 = vunpack.c.l.b16 %v420
    %v1486 = vunpack.c.h.b16 %v420
    %v1487 = vunpack.c.l.b16 %v421
    %v1488 = vunpack.c.h.b16 %v421
    %v1489 = vunpack.c.l.b16 %v422
    %v1490 = vunpack.c.h.b16 %v422
    %v1491 = vunpack.c.l.b16 %v423
    %v1492 = vunpack.c.h.b16 %v423
    %v1493 = vunpack.c.l.b16 %v424
    %v1494 = vunpack.c.h.b16 %v424
    %v1495 = vunpack.c.l.b16 %v425
    %v1496 = vunpack.c.h.b16 %v425
    %v1497 = vunpack.c.l.b16 %v426
    %v1498 = vunpack.c.h.b16 %v426
    %v1499 = vunpack.c.l.b16 %v427
    %v1500 = vunpack.c.h.b16 %v427
    %v1501 = vunpack.c.l.b16 %v428
    %v1502 = vunpack.c.h.b16 %v428
    %v1503 = vunpack.c.l.b16 %v429
    %v1504 = vunpack.c.h.b16 %v429
    %v1505 = vunpack.c.l.b16 %v430
    %v1506 = vunpack.c.h.b16 %v430
    %v1507 = vunpack.c.l.b16 %v431
    %v1508 = vunpack.c.h.b16 %v431
    %v1509 = vunpack.c.l.b16 %v432
    %v1510 = vunpack.c.h.b16 %v432
    %v1511 = vunpack.c.l.b16 %v433
    %v1512 = vunpack.c.h.b16 %v433
    %v1513 = vunpack.c.l.b16 %v434
    %v1514 = vunpack.c.h.b16 %v434
    %v1515 = vunpack.c.l.b16 %v435
    %v1516 = vunpack.c.h.b16 %v435
    %v1517 = vunpack.c.l.b16 %v436
    %v1518 = vunpack.c.h.b16 %v436
    %v1519 = vunpack.c.l.b16 %v437
    %v1520 = vunpack.c.h.b16 %v437
    %v1521 = vunpack.c.l.b16 %v438
    %v1522 = vunpack.c.h.b16 %v438
    %v1523 = vunpack.c.l.b16 %v439
    %v1524 = vunpack.c.h.b16 %v439
    %v1525 = vunpack.c.l.b16 %v440
    %v1526 = vunpack.c.h.b16 %v440
    %v1527 = vunpack.c.l.b16 %v441
    %v1528 = vunpack.c.h.b16 %v441
    %v1529 = vunpack.c.l.b16 %v442
    %v1530 = vunpack.c.h.b16 %v442
    %v1531 = vunpack.c.l.b16 %v443
    %v1532 = vunpack.c.h.b16 %v443
    %v1533 = vunpack.c.l.b16 %v444
    %v1534 = vunpack.c.h.b16 %v444
    %v1535 = vunpack.c.l.b16 %v445
    %v1536 = vunpack.c.h.b16 %v445
    %v1537 = vunpack.c.l.b16 %v446
    %v1538 = vunpack.c.h.b16 %v446
    %v1539 = vpack.c.b16 %v839, %v835
    %v1540 = vpack.c.b16 %v840, %v836
    %v1541 = vpack.c.b16 %v841, %v837
    %v1542 = vpack.c.b16 %v842, %v838
    %v1543 = vpack.c.b16 %v847, %v843
    %v1544 = vpack.c.b16 %v848, %v844
    %v1545 = vpack.c.b16 %v849, %v845
    %v1546 = vpack.c.b16 %v850, %v846
    %v1547 = vpack.c.b16 %v855, %v851
    %v1548 = vpack.c.b16 %v856, %v852
    %v1549 = vpack.c.b16 %v857, %v853
    %v1550 = vpack.c.b16 %v858, %v854
    %v1551 = vpack.c.b16 %v863, %v859
    %v1552 = vpack.c.b16 %v864, %v860
    %v1553 = vpack.c.b16 %v865, %v861
    %v1554 = vpack.c.b16 %v866, %v862
    %v1555 = vpack.c.b16 %v871, %v867
    %v1556 = vpack.c.b16 %v872, %v868
    %v1557 = vpack.c.b16 %v873, %v869
    %v1558 = vpack.c.b16 %v874, %v870
    %v1559 = vpack.c.b16 %v879, %v875
    %v1560 = vpack.c.b16 %v880, %v876
    %v1561 = vpack.c.b16 %v881, %v877
    %v1562 = vpack.c.b16 %v882, %v878
    %v1563 = vpack.c.b16 %v887, %v883
    %v1564 = vpack.c.b16 %v888, %v884
    %v1565 = vpack.c.b16 %v889, %v885
    %v1566 = vpack.c.b16 %v890, %v886
    %v1567 = vpack.c.b16 %v895, %v891
    %v1568 = vpack.c.b16 %v896, %v892
    %v1569 = vpack.c.b16 %v897, %v893
    %v1570 = vpack.c.b16 %v898, %v894
    %v1571 = vpack.c.b16 %v903, %v899
    %v1572 = vpack.c.b16 %v904, %v900
    %v1573 = vpack.c.b16 %v905, %v901
    %v1574 = vpack.c.b16 %v906, %v902
    %v1575 = vpack.c.b16 %v911, %v907
    %v1576 = vpack.c.b16 %v912, %v908
    %v1577 = vpack.c.b16 %v913, %v909
    %v1578 = vpack.c.b16 %v914, %v910
    %v1579 = vpack.c.b16 %v919, %v915
    %v1580 = vpack.c.b16 %v920, %v916
    %v1581 = vpack.c.b16 %v921, %v917
    %v1582 = vpack.c.b16 %v922, %v918
    %v1583 = vpack.c.b16 %v927, %v923
    %v1584 = vpack.c.b16 %v928, %v924
    %v1585 = vpack.c.b16 %v929, %v925
    %v1586 = vpack.c.b16 %v930, %v926
    %v1587 = vpack.c.b16 %v935, %v931
    %v1588 = vpack.c.b16 %v936, %v932
    %v1589 = vpack.c.b16 %v937, %v933
    %v1590 = vpack.c.b16 %v938, %v934
    %v1591 = vpack.c.b16 %v943, %v939
    %v1592 = vpack.c.b16 %v944, %v940
    %v1593 = vpack.c.b16 %v945, %v941
    %v1594 = vpack.c.b16 %v946, %v942
    %v1595 = vpack.c.b16 %v951, %v947
    %v1596 = vpack.c.b16 %v952, %v948
    %v1597 = vpack.c.b16 %v953, %v949
    %v1598 = vpack.c.b16 %v954, %v950
    %v1599 = vpack.c.b16 %v959, %v955
    %v1600 = vpack.c.b16 %v960, %v956
    %v1601 = vpack.c.b16 %v961, %v957
    %v1602 = vpack.c.b16 %v962, %v958
    %v1603 = vpack.c.b16 %v967, %v963
    %v1604 = vpack.c.b16 %v968, %v964
    %v1605 = vpack.c.b16 %v969, %v965
    %v1606 = vpack.c.b16 %v970, %v966
    %v1607 = vpack.c.b16 %v975, %v971
    %v1608 = vpack.c.b16 %v976, %v972
    %v1609 = vpack.c.b16 %v977, %v973
    %v1610 = vpack.c.b16 %v978, %v974
    %v1611 = vpack.c.b16 %v983, %v979
    %v1612 = vpack.c.b16 %v984, %v980
    %v1613 = vpack.c.b16 %v985, %v981
    %v1614 = vpack.c.b16 %v986, %v982
    %v1615 = vpack.c.b16 %v991, %v987
    %v1616 = vpack.c.b16 %v992, %v988
    %v1617 = vpack.c.b16 %v993, %v989
    %v1618 = vpack.c.b16 %v994, %v990
    %v1619 = vpack.c.b16 %v999, %v995
    %v1620 = vpack.c.b16 %v1000, %v996
    %v1621 = vpack.c.b16 %v1001, %v997
    %v1622 = vpack.c.b16 %v1002, %v998
    %v1623 = vpack.c.b16 %v1007, %v1003
    %v1624 = vpack.c.b16 %v1008, %v1004
    %v1625 = vpack.c.b16 %v1009, %v1005
    %v1626 = vpack.c.b16 %v1010, %v1006
    %v1627 = vpack.c.b16 %v1015, %v1011
    %v1628 = vpack.c.b16 %v1016, %v1012
    %v1629 = vpack.c.b16 %v1017, %v1013
    %v1630 = vpack.c.b16 %v1018, %v1014
    %v1631 = vpack.c.b16 %v1023, %v1019
    %v1632 = vpack.c.b16 %v1024, %v1020
    %v1633 = vpack.c.b16 %v1025, %v1021
    %v1634 = vpack.c.b16 %v1026, %v1022
    %v1635 = vpack.c.b16 %v1031, %v1027
    %v1636 = vpack.c.b16 %v1032, %v1028
    %v1637 = vpack.c.b16 %v1033, %v1029
    %v1638 = vpack.c.b16 %v1034, %v1030
    %v1639 = vpack.c.b16 %v1039, %v1035
    %v1640 = vpack.c.b16 %v1040, %v1036
    %v1641 = vpack.c.b16 %v1041, %v1037
    %v1642 = vpack.c.b16 %v1042, %v1038
    %v1643 = vpack.c.b16 %v1047, %v1043
    %v1644 = vpack.c.b16 %v1048, %v1044
    %v1645 = vpack.c.b16 %v1049, %v1045
    %v1646 = vpack.c.b16 %v1050, %v1046
    %v1647 = vpack.c.b16 %v1055, %v1051
    %v1648 = vpack.c.b16 %v1056, %v1052
    %v1649 = vpack.c.b16 %v1057, %v1053
    %v1650 = vpack.c.b16 %v1058, %v1054
    %v1651 = vpack.c.b16 %v1063, %v1059
    %v1652 = vpack.c.b16 %v1064, %v1060
    %v1653 = vpack.c.b16 %v1065, %v1061
    %v1654 = vpack.c.b16 %v1066, %v1062
    %v1655 = vpack.c.b16 %v1071, %v1067
    %v1656 = vpack.c.b16 %v1072, %v1068
    %v1657 = vpack.c.b16 %v1073, %v1069
    %v1658 = vpack.c.b16 %v1074, %v1070
    %v1659 = vpack.c.b16 %v1079, %v1075
    %v1660 = vpack.c.b16 %v1080, %v1076
    %v1661 = vpack.c.b16 %v1081, %v1077
    %v1662 = vpack.c.b16 %v1082, %v1078
    %v1663 = vpack.c.b16 %v1087, %v1083
    %v1664 = vpack.c.b16 %v1088, %v1084
    %v1665 = vpack.c.b16 %v1089, %v1085
    %v1666 = vpack.c.b16 %v1090, %v1086
    %v1667 = vpack.c.b16 %v1095, %v1091
    %v1668 = vpack.c.b16 %v1096, %v1092
    %v1669 = vpack.c.b16 %v1097, %v1093
    %v1670 = vpack.c.b16 %v1098, %v1094
    %v1671 = vpack.c.b16 %v1103, %v1099
    %v1672 = vpack.c.b16 %v1104, %v1100
    %v1673 = vpack.c.b16 %v1105, %v1101
    %v1674 = vpack.c.b16 %v1106, %v1102
    %v1675 = vpack.c.b16 %v1111, %v1107
    %v1676 = vpack.c.b16 %v1112, %v1108
    %v1677 = vpack.c.b16 %v1113, %v1109
    %v1678 = vpack.c.b16 %v1114, %v1110
    %v1679 = vpack.c.b16 %v1119, %v1115
    %v1680 = vpack.c.b16 %v1120, %v1116
    %v1681 = vpack.c.b16 %v1121, %v1117
    %v1682 = vpack.c.b16 %v1122, %v1118
    %v1683 = vpack.c.b16 %v1127, %v1123
    %v1684 = vpack.c.b16 %v1128, %v1124
    %v1685 = vpack.c.b16 %v1129, %v1125
    %v1686 = vpack.c.b16 %v1130, %v1126
    %v1687 = vpack.c.b16 %v1135, %v1131
    %v1688 = vpack.c.b16 %v1136, %v1132
    %v1689 = vpack.c.b16 %v1137, %v1133
    %v1690 = vpack.c.b16 %v1138, %v1134
    %v1691 = vpack.c.b16 %v1143, %v1139
    %v1692 = vpack.c.b16 %v1144, %v1140
    %v1693 = vpack.c.b16 %v1145, %v1141
    %v1694 = vpack.c.b16 %v1146, %v1142
    %v1695 = vpack.c.b16 %v1151, %v1147
    %v1696 = vpack.c.b16 %v1152, %v1148
    %v1697 = vpack.c.b16 %v1153, %v1149
    %v1698 = vpack.c.b16 %v1154, %v1150
    %v1699 = vpack.c.b16 %v1159, %v1155
    %v1700 = vpack.c.b16 %v1160, %v1156
    %v1701 = vpack.c.b16 %v1161, %v1157
    %v1702 = vpack.c.b16 %v1162, %v1158
    %v1703 = vpack.c.b16 %v1167, %v1163
    %v1704 = vpack.c.b16 %v1168, %v1164
    %v1705 = vpack.c.b16 %v1169, %v1165
    %v1706 = vpack.c.b16 %v1170, %v1166
    %v1707 = vpack.c.b16 %v1175, %v1171
    %v1708 = vpack.c.b16 %v1176, %v1172
    %v1709 = vpack.c.b16 %v1177, %v1173
    %v1710 = vpack.c.b16 %v1178, %v1174
    %v1711 = vpack.c.b16 %v1183, %v1179
    %v1712 = vpack.c.b16 %v1184, %v1180
    %v1713 = vpack.c.b16 %v1185, %v1181
    %v1714 = vpack.c.b16 %v1186, %v1182
    %v1715 = vpack.c.b16 %v1191, %v1187
    %v1716 = vpack.c.b16 %v1192, %v1188
    %v1717 = vpack.c.b16 %v1193, %v1189
    %v1718 = vpack.c.b16 %v1194, %v1190
    %v1719 = vpack.c.b16 %v1199, %v1195
    %v1720 = vpack.c.b16 %v1200, %v1196
    %v1721 = vpack.c.b16 %v1201, %v1197
    %v1722 = vpack.c.b16 %v1202, %v1198
    %v1723 = vpack.c.b16 %v1207, %v1203
    %v1724 = vpack.c.b16 %v1208, %v1204
    %v1725 = vpack.c.b16 %v1209, %v1205
    %v1726 = vpack.c.b16 %v1210, %v1206
    %v1727 = vpack.c.b16 %v1215, %v1211
    %v1728 = vpack.c.b16 %v1216, %v1212
    %v1729 = vpack.c.b16 %v1217, %v1213
    %v1730 = vpack.c.b16 %v1218, %v1214
    %v1731 = vpack.c.b16 %v1223, %v1219
    %v1732 = vpack.c.b16 %v1224, %v1220
    %v1733 = vpack.c.b16 %v1225, %v1221
    %v1734 = vpack.c.b16 %v1226, %v1222
    %v1735 = vpack.c.b16 %v1231, %v1227
    %v1736 = vpack.c.b16 %v1232, %v1228
    %v1737 = vpack.c.b16 %v1233, %v1229
    %v1738 = vpack.c.b16 %v1234, %v1230
    %v1739 = vpack.c.b16 %v1239, %v1235
    %v1740 = vpack.c.b16 %v1240, %v1236
    %v1741 = vpack.c.b16 %v1241, %v1237
    %v1742 = vpack.c.b16 %v1242, %v1238
    %v1743 = vpack.c.b16 %v1247, %v1243
    %v1744 = vpack.c.b16 %v1248, %v1244
    %v1745 = vpack.c.b16 %v1249, %v1245
    %v1746 = vpack.c.b16 %v1250, %v1246
    %v1747 = vpack.c.b16 %v1255, %v1251
    %v1748 = vpack.c.b16 %v1256, %v1252
    %v1749 = vpack.c.b16 %v1257, %v1253
    %v1750 = vpack.c.b16 %v1258, %v1254
    %v1751 = vpack.c.b16 %v1263, %v1259
    %v1752 = vpack.c.b16 %v1264, %v1260
    %v1753 = vpack.c.b16 %v1265, %v1261
    %v1754 = vpack.c.b16 %v1266, %v1262
    %v1755 = vpack.c.b16 %v1271, %v1267
    %v1756 = vpack.c.b16 %v1272, %v1268
    %v1757 = vpack.c.b16 %v1273, %v1269
    %v1758 = vpack.c.b16 %v1274, %v1270
    %v1759 = vpack.c.b16 %v1279, %v1275
    %v1760 = vpack.c.b16 %v1280, %v1276
    %v1761 = vpack.c.b16 %v1281, %v1277
    %v1762 = vpack.c.b16 %v1282, %v1278
    %v1763 = vpack.c.b16 %v1287, %v1283
    %v1764 = vpack.c.b16 %v1288, %v1284
    %v1765 = vpack.c.b16 %v1289, %v1285
    %v1766 = vpack.c.b16 %v1290, %v1286
    %v1767 = vpack.c.b16 %v1295, %v1291
    %v1768 = vpack.c.b16 %v1296, %v1292
    %v1769 = vpack.c.b16 %v1297, %v1293
    %v1770 = vpack.c.b16 %v1298, %v1294
    %v1771 = vpack.c.b16 %v1303, %v1299
    %v1772 = vpack.c.b16 %v1304, %v1300
    %v1773 = vpack.c.b16 %v1305, %v1301
    %v1774 = vpack.c.b16 %v1306, %v1302
    %v1775 = vpack.c.b16 %v1311, %v1307
    %v1776 = vpack.c.b16 %v1312, %v1308
    %v1777 = vpack.c.b16 %v1313, %v1309
    %v1778 = vpack.c.b16 %v1314, %v1310
    %v1779 = vpack.c.b16 %v1319, %v1315
    %v1780 = vpack.c.b16 %v1320, %v1316
    %v1781 = vpack.c.b16 %v1321, %v1317
    %v1782 = vpack.c.b16 %v1322, %v1318
    %v1783 = vpack.c.b16 %v1327, %v1323
    %v1784 = vpack.c.b16 %v1328, %v1324
    %v1785 = vpack.c.b16 %v1329, %v1325
    %v1786 = vpack.c.b16 %v1330, %v1326
    %v1787 = vpack.c.b16 %v1335, %v1331
    %v1788 = vpack.c.b16 %v1336, %v1332
    %v1789 = vpack.c.b16 %v1337, %v1333
    %v1790 = vpack.c.b16 %v1338, %v1334
    %v1791 = vpack.c.b16 %v1343, %v1339
    %v1792 = vpack.c.b16 %v1344, %v1340
    %v1793 = vpack.c.b16 %v1345, %v1341
    %v1794 = vpack.c.b16 %v1346, %v1342
    %v1795 = vpack.c.b16 %v1351, %v1347
    %v1796 = vpack.c.b16 %v1352, %v1348
    %v1797 = vpack.c.b16 %v1353, %v1349
    %v1798 = vpack.c.b16 %v1354, %v1350
    %v1799 = vpack.c.b16 %v1359, %v1355
    %v1800 = vpack.c.b16 %v1360, %v1356
    %v1801 = vpack.c.b16 %v1361, %v1357
    %v1802 = vpack.c.b16 %v1362, %v1358
    %v1803 = vpack.c.b16 %v1367, %v1363
    %v1804 = vpack.c.b16 %v1368, %v1364
    %v1805 = vpack.c.b16 %v1369, %v1365
    %v1806 = vpack.c.b16 %v1370, %v1366
    %v1807 = vpack.c.b16 %v1375, %v1371
    %v1808 = vpack.c.b16 %v1376, %v1372
    %v1809 = vpack.c.b16 %v1377, %v1373
    %v1810 = vpack.c.b16 %v1378, %v1374
    %v1811 = vpack.c.b16 %v1383, %v1379
    %v1812 = vpack.c.b16 %v1384, %v1380
    %v1813 = vpack.c.b16 %v1385, %v1381
    %v1814 = vpack.c.b16 %v1386, %v1382
    %v1815 = vpack.c.b16 %v1391, %v1387
    %v1816 = vpack.c.b16 %v1392, %v1388
    %v1817 = vpack.c.b16 %v1393, %v1389
    %v1818 = vpack.c.b16 %v1394, %v1390
    %v1819 = vpack.c.b16 %v1399, %v1395
    %v1820 = vpack.c.b16 %v1400, %v1396
    %v1821 = vpack.c.b16 %v1401, %v1397
    %v1822 = vpack.c.b16 %v1402, %v1398
    %v1823 = vpack.c.b16 %v1407, %v1403
    %v1824 = vpack.c.b16 %v1408, %v1404
    %v1825 = vpack.c.b16 %v1409, %v1405
    %v1826 = vpack.c.b16 %v1410, %v1406
    %v1827 = vpack.c.b16 %v1415, %v1411
    %v1828 = vpack.c.b16 %v1416, %v1412
    %v1829 = vpack.c.b16 %v1417, %v1413
    %v1830 = vpack.c.b16 %v1418, %v1414
    %v1831 = vpack.c.b16 %v1423, %v1419
    %v1832 = vpack.c.b16 %v1424, %v1420
    %v1833 = vpack.c.b16 %v1425, %v1421
    %v1834 = vpack.c.b16 %v1426, %v1422
    %v1835 = vpack.c.b16 %v1431, %v1427
    %v1836 = vpack.c.b16 %v1432, %v1428
    %v1837 = vpack.c.b16 %v1433, %v1429
    %v1838 = vpack.c.b16 %v1434, %v1430
    %v1839 = vpack.c.b16 %v1439, %v1435
    %v1840 = vpack.c.b16 %v1440, %v1436
    %v1841 = vpack.c.b16 %v1441, %v1437
    %v1842 = vpack.c.b16 %v1442, %v1438
    %v1843 = vpack.c.b16 %v1447, %v1443
    %v1844 = vpack.c.b16 %v1448, %v1444
    %v1845 = vpack.c.b16 %v1449, %v1445
    %v1846 = vpack.c.b16 %v1450, %v1446
    %v1847 = vpack.c.b16 %v1455, %v1451
    %v1848 = vpack.c.b16 %v1456, %v1452
    %v1849 = vpack.c.b16 %v1457, %v1453
    %v1850 = vpack.c.b16 %v1458, %v1454
    %v1851 = vpack.c.b16 %v1463, %v1459
    %v1852 = vpack.c.b16 %v1464, %v1460
    %v1853 = vpack.c.b16 %v1465, %v1461
    %v1854 = vpack.c.b16 %v1466, %v1462
    %v1855 = vpack.c.b16 %v1471, %v1467
    %v1856 = vpack.c.b16 %v1472, %v1468
    %v1857 = vpack.c.b16 %v1473, %v1469
    %v1858 = vpack.c.b16 %v1474, %v1470
    %v1859 = vpack.c.b16 %v1479, %v1475
    %v1860 = vpack.c.b16 %v1480, %v1476
    %v1861 = vpack.c.b16 %v1481, %v1477
    %v1862 = vpack.c.b16 %v1482, %v1478
    %v1863 = vpack.c.b16 %v1487, %v1483
    %v1864 = vpack.c.b16 %v1488, %v1484
    %v1865 = vpack.c.b16 %v1489, %v1485
    %v1866 = vpack.c.b16 %v1490, %v1486
    %v1867 = vpack.c.b16 %v1495, %v1491
    %v1868 = vpack.c.b16 %v1496, %v1492
    %v1869 = vpack.c.b16 %v1497, %v1493
    %v1870 = vpack.c.b16 %v1498, %v1494
    %v1871 = vpack.c.b16 %v1503, %v1499
    %v1872 = vpack.c.b16 %v1504, %v1500
    %v1873 = vpack.c.b16 %v1505, %v1501
    %v1874 = vpack.c.b16 %v1506, %v1502
    %v1875 = vpack.c.b16 %v1511, %v1507
    %v1876 = vpack.c.b16 %v1512, %v1508
    %v1877 = vpack.c.b16 %v1513, %v1509
    %v1878 = vpack.c.b16 %v1514, %v1510
    %v1879 = vpack.c.b16 %v1519, %v1515
    %v1880 = vpack.c.b16 %v1520, %v1516
    %v1881 = vpack.c.b16 %v1521, %v1517
    %v1882 = vpack.c.b16 %v1522, %v1518
    %v1883 = vpack.c.b16 %v1527, %v1523
    %v1884 = vpack.c.b16 %v1528, %v1524
    %v1885 = vpack.c.b16 %v1529, %v1525
    %v1886 = vpack.c.b16 %v1530, %v1526
    %v1887 = vpack.c.b16 %v1535, %v1531
    %v1888 = vpack.c.b16 %v1536, %v1532
    %v1889 = vpack.c.b16 %v1537, %v1533
    %v1890 = vpack.c.b16 %v1538, %v1534
    %2243 = vmatpush.bf16.msra.mxu0 %v1567
    %2244 = vmatpush.bf16.msra.mxu0 %v1563
    %2245 = vmatpush.bf16.msra.mxu0 %v1559
    %2246 = vmatpush.bf16.msra.mxu0 %v1555
    %2247 = vmatpush.bf16.msra.mxu0 %v1551
    %2248 = vmatpush.bf16.msra.mxu0 %v1547
    %2249 = vmatpush.bf16.msra.mxu0 %v1543
    %2250 = vmatpush.bf16.msra.mxu0 %v1539
    %2251 = vmatmul.bf16.gmra.mxu0 %v459
    %v2252 = vpop.f32.mrf.mxu0
    %v2253 = vadd.f32 %v449, %v2252
    %v2254 = vpop.f32.mrf.mxu0
    %2255 = vdwg.mxu0
    %2256 = vmatpush.bf16.msra.mxu0 %v1599
    %2257 = vmatpush.bf16.msra.mxu0 %v1595
    %2258 = vmatpush.bf16.msra.mxu0 %v1591
    %2259 = vmatpush.bf16.msra.mxu0 %v1587
    %2260 = vmatpush.bf16.msra.mxu0 %v1583
    %2261 = vmatpush.bf16.msra.mxu0 %v1579
    %2262 = vmatpush.bf16.msra.mxu0 %v1575
    %2263 = vmatpush.bf16.msra.mxu0 %v1571
    %2264 = vmatmul.bf16.gmra.mxu0 %v460
    %v2265 = vpop.f32.mrf.mxu0
    %v2266 = vadd.f32 %v2253, %v2265
    %v2267 = vpop.f32.mrf.mxu0
    %2268 = vdwg.mxu0
    %2269 = vmatpush.bf16.msra.mxu0 %v1631
    %2270 = vmatpush.bf16.msra.mxu0 %v1627
    %2271 = vmatpush.bf16.msra.mxu0 %v1623
    %2272 = vmatpush.bf16.msra.mxu0 %v1619
    %2273 = vmatpush.bf16.msra.mxu0 %v1615
    %2274 = vmatpush.bf16.msra.mxu0 %v1611
    %2275 = vmatpush.bf16.msra.mxu0 %v1607
    %2276 = vmatpush.bf16.msra.mxu0 %v1603
    %2277 = vmatmul.bf16.gmra.mxu0 %v461
    %v2278 = vpop.f32.mrf.mxu0
    %v2279 = vadd.f32 %v2266, %v2278
    %v2280 = vpop.f32.mrf.mxu0
    %2281 = vdwg.mxu0
    %2282 = vmatpush.bf16.msra.mxu0 %v1663
    %2283 = vmatpush.bf16.msra.mxu0 %v1659
    %2284 = vmatpush.bf16.msra.mxu0 %v1655
    %2285 = vmatpush.bf16.msra.mxu0 %v1651
    %2286 = vmatpush.bf16.msra.mxu0 %v1647
    %2287 = vmatpush.bf16.msra.mxu0 %v1643
    %2288 = vmatpush.bf16.msra.mxu0 %v1639
    %2289 = vmatpush.bf16.msra.mxu0 %v1635
    %2290 = vmatmul.bf16.gmra.mxu0 %v462
    %v2291 = vpop.f32.mrf.mxu0
    %v2292 = vadd.f32 %v2279, %v2291
    %v2293 = vpop.f32.mrf.mxu0
    %2294 = vdwg.mxu0
    %2295 = vmatpush.bf16.msra.mxu0 %v1695
    %2296 = vmatpush.bf16.msra.mxu0 %v1691
    %2297 = vmatpush.bf16.msra.mxu0 %v1687
    %2298 = vmatpush.bf16.msra.mxu0 %v1683
    %2299 = vmatpush.bf16.msra.mxu0 %v1679
    %2300 = vmatpush.bf16.msra.mxu0 %v1675
    %2301 = vmatpush.bf16.msra.mxu0 %v1671
    %2302 = vmatpush.bf16.msra.mxu0 %v1667
    %2303 = vmatmul.bf16.gmra.mxu0 %v463
    %v2304 = vpop.f32.mrf.mxu0
    %v2305 = vadd.f32 %v2292, %v2304
    %v2306 = vpop.f32.mrf.mxu0
    %2307 = vdwg.mxu0
    %2308 = vmatpush.bf16.msra.mxu0 %v1727
    %2309 = vmatpush.bf16.msra.mxu0 %v1723
    %2310 = vmatpush.bf16.msra.mxu0 %v1719
    %2311 = vmatpush.bf16.msra.mxu0 %v1715
    %2312 = vmatpush.bf16.msra.mxu0 %v1711
    %2313 = vmatpush.bf16.msra.mxu0 %v1707
    %2314 = vmatpush.bf16.msra.mxu0 %v1703
    %2315 = vmatpush.bf16.msra.mxu0 %v1699
    %2316 = vmatmul.bf16.gmra.mxu0 %v464
    %v2317 = vpop.f32.mrf.mxu0
    %v2318 = vadd.f32 %v2305, %v2317
    %v2319 = vpop.f32.mrf.mxu0
    %2320 = vdwg.mxu0
    %2321 = vmatpush.bf16.msra.mxu0 %v1759
    %2322 = vmatpush.bf16.msra.mxu0 %v1755
    %2323 = vmatpush.bf16.msra.mxu0 %v1751
    %2324 = vmatpush.bf16.msra.mxu0 %v1747
    %2325 = vmatpush.bf16.msra.mxu0 %v1743
    %2326 = vmatpush.bf16.msra.mxu0 %v1739
    %2327 = vmatpush.bf16.msra.mxu0 %v1735
    %2328 = vmatpush.bf16.msra.mxu0 %v1731
    %2329 = vmatmul.bf16.gmra.mxu0 %v465
    %v2330 = vpop.f32.mrf.mxu0
    %v2331 = vadd.f32 %v2318, %v2330
    %v2332 = vpop.f32.mrf.mxu0
    %2333 = vdwg.mxu0
    %2334 = vmatpush.bf16.msra.mxu0 %v1791
    %2335 = vmatpush.bf16.msra.mxu0 %v1787
    %2336 = vmatpush.bf16.msra.mxu0 %v1783
    %2337 = vmatpush.bf16.msra.mxu0 %v1779
    %2338 = vmatpush.bf16.msra.mxu0 %v1775
    %2339 = vmatpush.bf16.msra.mxu0 %v1771
    %2340 = vmatpush.bf16.msra.mxu0 %v1767
    %2341 = vmatpush.bf16.msra.mxu0 %v1763
    %2342 = vmatmul.bf16.gmra.mxu0 %v466
    %v2343 = vpop.f32.mrf.mxu0
    %v2344 = vadd.f32 %v2331, %v2343
    %v2345 = vpop.f32.mrf.mxu0
    %2346 = vdwg.mxu0
    %2347 = vmatpush.bf16.msra.mxu0 %v1823
    %2348 = vmatpush.bf16.msra.mxu0 %v1819
    %2349 = vmatpush.bf16.msra.mxu0 %v1815
    %2350 = vmatpush.bf16.msra.mxu0 %v1811
    %2351 = vmatpush.bf16.msra.mxu0 %v1807
    %2352 = vmatpush.bf16.msra.mxu0 %v1803
    %2353 = vmatpush.bf16.msra.mxu0 %v1799
    %2354 = vmatpush.bf16.msra.mxu0 %v1795
    %2355 = vmatmul.bf16.gmra.mxu0 %v469
    %v2356 = vpop.f32.mrf.mxu0
    %v2357 = vadd.f32 %v2344, %v2356
    %v2358 = vpop.f32.mrf.mxu0
    %2359 = vdwg.mxu0
    %2360 = vmatpush.bf16.msra.mxu0 %v1855
    %2361 = vmatpush.bf16.msra.mxu0 %v1851
    %2362 = vmatpush.bf16.msra.mxu0 %v1847
    %2363 = vmatpush.bf16.msra.mxu0 %v1843
    %2364 = vmatpush.bf16.msra.mxu0 %v1839
    %2365 = vmatpush.bf16.msra.mxu0 %v1835
    %2366 = vmatpush.bf16.msra.mxu0 %v1831
    %2367 = vmatpush.bf16.msra.mxu0 %v1827
    %2368 = vmatmul.bf16.gmra.mxu0 %v470
    %v2369 = vpop.f32.mrf.mxu0
    %v2370 = vadd.f32 %v2357, %v2369
    %v2371 = vpop.f32.mrf.mxu0
    %2372 = vdwg.mxu0
    %2373 = vmatpush.bf16.msra.mxu0 %v1887
    %2374 = vmatpush.bf16.msra.mxu0 %v1883
    %2375 = vmatpush.bf16.msra.mxu0 %v1879
    %2376 = vmatpush.bf16.msra.mxu0 %v1875
    %2377 = vmatpush.bf16.msra.mxu0 %v1871
    %2378 = vmatpush.bf16.msra.mxu0 %v1867
    %2379 = vmatpush.bf16.msra.mxu0 %v1863
    %2380 = vmatpush.bf16.msra.mxu0 %v1859
    %2381 = vmatmul.bf16.gmra.mxu0 %v471
    %v2382 = vpop.f32.mrf.mxu0
    %v2383 = vadd.f32 %v2370, %v2382
    %v2384 = vpop.f32.mrf.mxu0
    %2385 = vdwg.mxu0
    %2386 = vmatpush.bf16.msra.mxu0 %v1568
    %2387 = vmatpush.bf16.msra.mxu0 %v1564
    %2388 = vmatpush.bf16.msra.mxu0 %v1560
    %2389 = vmatpush.bf16.msra.mxu0 %v1556
    %2390 = vmatpush.bf16.msra.mxu0 %v1552
    %2391 = vmatpush.bf16.msra.mxu0 %v1548
    %2392 = vmatpush.bf16.msra.mxu0 %v1544
    %2393 = vmatpush.bf16.msra.mxu0 %v1540
    %2394 = vmatmul.bf16.gmra.mxu0 %v459
    %v2395 = vpop.f32.mrf.mxu0
    %v2396 = vadd.f32 %v450, %v2395
    %v2397 = vpop.f32.mrf.mxu0
    %2398 = vdwg.mxu0
    %2399 = vmatpush.bf16.msra.mxu0 %v1600
    %2400 = vmatpush.bf16.msra.mxu0 %v1596
    %2401 = vmatpush.bf16.msra.mxu0 %v1592
    %2402 = vmatpush.bf16.msra.mxu0 %v1588
    %2403 = vmatpush.bf16.msra.mxu0 %v1584
    %2404 = vmatpush.bf16.msra.mxu0 %v1580
    %2405 = vmatpush.bf16.msra.mxu0 %v1576
    %2406 = vmatpush.bf16.msra.mxu0 %v1572
    %2407 = vmatmul.bf16.gmra.mxu0 %v460
    %v2408 = vpop.f32.mrf.mxu0
    %v2409 = vadd.f32 %v2396, %v2408
    %v2410 = vpop.f32.mrf.mxu0
    %2411 = vdwg.mxu0
    %2412 = vmatpush.bf16.msra.mxu0 %v1632
    %2413 = vmatpush.bf16.msra.mxu0 %v1628
    %2414 = vmatpush.bf16.msra.mxu0 %v1624
    %2415 = vmatpush.bf16.msra.mxu0 %v1620
    %2416 = vmatpush.bf16.msra.mxu0 %v1616
    %2417 = vmatpush.bf16.msra.mxu0 %v1612
    %2418 = vmatpush.bf16.msra.mxu0 %v1608
    %2419 = vmatpush.bf16.msra.mxu0 %v1604
    %2420 = vmatmul.bf16.gmra.mxu0 %v461
    %v2421 = vpop.f32.mrf.mxu0
    %v2422 = vadd.f32 %v2409, %v2421
    %v2423 = vpop.f32.mrf.mxu0
    %2424 = vdwg.mxu0
    %2425 = vmatpush.bf16.msra.mxu0 %v1664
    %2426 = vmatpush.bf16.msra.mxu0 %v1660
    %2427 = vmatpush.bf16.msra.mxu0 %v1656
    %2428 = vmatpush.bf16.msra.mxu0 %v1652
    %2429 = vmatpush.bf16.msra.mxu0 %v1648
    %2430 = vmatpush.bf16.msra.mxu0 %v1644
    %2431 = vmatpush.bf16.msra.mxu0 %v1640
    %2432 = vmatpush.bf16.msra.mxu0 %v1636
    %2433 = vmatmul.bf16.gmra.mxu0 %v462
    %v2434 = vpop.f32.mrf.mxu0
    %v2435 = vadd.f32 %v2422, %v2434
    %v2436 = vpop.f32.mrf.mxu0
    %2437 = vdwg.mxu0
    %2438 = vmatpush.bf16.msra.mxu0 %v1696
    %2439 = vmatpush.bf16.msra.mxu0 %v1692
    %2440 = vmatpush.bf16.msra.mxu0 %v1688
    %2441 = vmatpush.bf16.msra.mxu0 %v1684
    %2442 = vmatpush.bf16.msra.mxu0 %v1680
    %2443 = vmatpush.bf16.msra.mxu0 %v1676
    %2444 = vmatpush.bf16.msra.mxu0 %v1672
    %2445 = vmatpush.bf16.msra.mxu0 %v1668
    %2446 = vmatmul.bf16.gmra.mxu0 %v463
    %v2447 = vpop.f32.mrf.mxu0
    %v2448 = vadd.f32 %v2435, %v2447
    %v2449 = vpop.f32.mrf.mxu0
    %2450 = vdwg.mxu0
    %2451 = vmatpush.bf16.msra.mxu0 %v1728
    %2452 = vmatpush.bf16.msra.mxu0 %v1724
    %2453 = vmatpush.bf16.msra.mxu0 %v1720
    %2454 = vmatpush.bf16.msra.mxu0 %v1716
    %2455 = vmatpush.bf16.msra.mxu0 %v1712
    %2456 = vmatpush.bf16.msra.mxu0 %v1708
    %2457 = vmatpush.bf16.msra.mxu0 %v1704
    %2458 = vmatpush.bf16.msra.mxu0 %v1700
    %2459 = vmatmul.bf16.gmra.mxu0 %v464
    %v2460 = vpop.f32.mrf.mxu0
    %v2461 = vadd.f32 %v2448, %v2460
    %v2462 = vpop.f32.mrf.mxu0
    %2463 = vdwg.mxu0
    %2464 = vmatpush.bf16.msra.mxu0 %v1760
    %2465 = vmatpush.bf16.msra.mxu0 %v1756
    %2466 = vmatpush.bf16.msra.mxu0 %v1752
    %2467 = vmatpush.bf16.msra.mxu0 %v1748
    %2468 = vmatpush.bf16.msra.mxu0 %v1744
    %2469 = vmatpush.bf16.msra.mxu0 %v1740
    %2470 = vmatpush.bf16.msra.mxu0 %v1736
    %2471 = vmatpush.bf16.msra.mxu0 %v1732
    %2472 = vmatmul.bf16.gmra.mxu0 %v465
    %v2473 = vpop.f32.mrf.mxu0
    %v2474 = vadd.f32 %v2461, %v2473
    %v2475 = vpop.f32.mrf.mxu0
    %2476 = vdwg.mxu0
    %2477 = vmatpush.bf16.msra.mxu0 %v1792
    %2478 = vmatpush.bf16.msra.mxu0 %v1788
    %2479 = vmatpush.bf16.msra.mxu0 %v1784
    %2480 = vmatpush.bf16.msra.mxu0 %v1780
    %2481 = vmatpush.bf16.msra.mxu0 %v1776
    %2482 = vmatpush.bf16.msra.mxu0 %v1772
    %2483 = vmatpush.bf16.msra.mxu0 %v1768
    %2484 = vmatpush.bf16.msra.mxu0 %v1764
    %2485 = vmatmul.bf16.gmra.mxu0 %v466
    %v2486 = vpop.f32.mrf.mxu0
    %v2487 = vadd.f32 %v2474, %v2486
    %v2488 = vpop.f32.mrf.mxu0
    %2489 = vdwg.mxu0
    %2490 = vmatpush.bf16.msra.mxu0 %v1824
    %2491 = vmatpush.bf16.msra.mxu0 %v1820
    %2492 = vmatpush.bf16.msra.mxu0 %v1816
    %2493 = vmatpush.bf16.msra.mxu0 %v1812
    %2494 = vmatpush.bf16.msra.mxu0 %v1808
    %2495 = vmatpush.bf16.msra.mxu0 %v1804
    %2496 = vmatpush.bf16.msra.mxu0 %v1800
    %2497 = vmatpush.bf16.msra.mxu0 %v1796
    %2498 = vmatmul.bf16.gmra.mxu0 %v469
    %v2499 = vpop.f32.mrf.mxu0
    %v2500 = vadd.f32 %v2487, %v2499
    %v2501 = vpop.f32.mrf.mxu0
    %2502 = vdwg.mxu0
    %2503 = vmatpush.bf16.msra.mxu0 %v1856
    %2504 = vmatpush.bf16.msra.mxu0 %v1852
    %2505 = vmatpush.bf16.msra.mxu0 %v1848
    %2506 = vmatpush.bf16.msra.mxu0 %v1844
    %2507 = vmatpush.bf16.msra.mxu0 %v1840
    %2508 = vmatpush.bf16.msra.mxu0 %v1836
    %2509 = vmatpush.bf16.msra.mxu0 %v1832
    %2510 = vmatpush.bf16.msra.mxu0 %v1828
    %2511 = vmatmul.bf16.gmra.mxu0 %v470
    %v2512 = vpop.f32.mrf.mxu0
    %v2513 = vadd.f32 %v2500, %v2512
    %v2514 = vpop.f32.mrf.mxu0
    %2515 = vdwg.mxu0
    %2516 = vmatpush.bf16.msra.mxu0 %v1888
    %2517 = vmatpush.bf16.msra.mxu0 %v1884
    %2518 = vmatpush.bf16.msra.mxu0 %v1880
    %2519 = vmatpush.bf16.msra.mxu0 %v1876
    %2520 = vmatpush.bf16.msra.mxu0 %v1872
    %2521 = vmatpush.bf16.msra.mxu0 %v1868
    %2522 = vmatpush.bf16.msra.mxu0 %v1864
    %2523 = vmatpush.bf16.msra.mxu0 %v1860
    %2524 = vmatmul.bf16.gmra.mxu0 %v471
    %v2525 = vpop.f32.mrf.mxu0
    %v2526 = vadd.f32 %v2513, %v2525
    %v2527 = vpop.f32.mrf.mxu0
    %2528 = vdwg.mxu0
    %2529 = vmatpush.bf16.msra.mxu0 %v1569
    %2530 = vmatpush.bf16.msra.mxu0 %v1565
    %2531 = vmatpush.bf16.msra.mxu0 %v1561
    %2532 = vmatpush.bf16.msra.mxu0 %v1557
    %2533 = vmatpush.bf16.msra.mxu0 %v1553
    %2534 = vmatpush.bf16.msra.mxu0 %v1549
    %2535 = vmatpush.bf16.msra.mxu0 %v1545
    %2536 = vmatpush.bf16.msra.mxu0 %v1541
    %2537 = vmatmul.bf16.gmra.mxu0 %v459
    %v2538 = vpop.f32.mrf.mxu0
    %v2539 = vadd.f32 %v451, %v2538
    %v2540 = vpop.f32.mrf.mxu0
    %2541 = vdwg.mxu0
    %2542 = vmatpush.bf16.msra.mxu0 %v1601
    %2543 = vmatpush.bf16.msra.mxu0 %v1597
    %2544 = vmatpush.bf16.msra.mxu0 %v1593
    %2545 = vmatpush.bf16.msra.mxu0 %v1589
    %2546 = vmatpush.bf16.msra.mxu0 %v1585
    %2547 = vmatpush.bf16.msra.mxu0 %v1581
    %2548 = vmatpush.bf16.msra.mxu0 %v1577
    %2549 = vmatpush.bf16.msra.mxu0 %v1573
    %2550 = vmatmul.bf16.gmra.mxu0 %v460
    %v2551 = vpop.f32.mrf.mxu0
    %v2552 = vadd.f32 %v2539, %v2551
    %v2553 = vpop.f32.mrf.mxu0
    %2554 = vdwg.mxu0
    %2555 = vmatpush.bf16.msra.mxu0 %v1633
    %2556 = vmatpush.bf16.msra.mxu0 %v1629
    %2557 = vmatpush.bf16.msra.mxu0 %v1625
    %2558 = vmatpush.bf16.msra.mxu0 %v1621
    %2559 = vmatpush.bf16.msra.mxu0 %v1617
    %2560 = vmatpush.bf16.msra.mxu0 %v1613
    %2561 = vmatpush.bf16.msra.mxu0 %v1609
    %2562 = vmatpush.bf16.msra.mxu0 %v1605
    %2563 = vmatmul.bf16.gmra.mxu0 %v461
    %v2564 = vpop.f32.mrf.mxu0
    %v2565 = vadd.f32 %v2552, %v2564
    %v2566 = vpop.f32.mrf.mxu0
    %2567 = vdwg.mxu0
    %2568 = vmatpush.bf16.msra.mxu0 %v1665
    %2569 = vmatpush.bf16.msra.mxu0 %v1661
    %2570 = vmatpush.bf16.msra.mxu0 %v1657
    %2571 = vmatpush.bf16.msra.mxu0 %v1653
    %2572 = vmatpush.bf16.msra.mxu0 %v1649
    %2573 = vmatpush.bf16.msra.mxu0 %v1645
    %2574 = vmatpush.bf16.msra.mxu0 %v1641
    %2575 = vmatpush.bf16.msra.mxu0 %v1637
    %2576 = vmatmul.bf16.gmra.mxu0 %v462
    %v2577 = vpop.f32.mrf.mxu0
    %v2578 = vadd.f32 %v2565, %v2577
    %v2579 = vpop.f32.mrf.mxu0
    %2580 = vdwg.mxu0
    %2581 = vmatpush.bf16.msra.mxu0 %v1697
    %2582 = vmatpush.bf16.msra.mxu0 %v1693
    %2583 = vmatpush.bf16.msra.mxu0 %v1689
    %2584 = vmatpush.bf16.msra.mxu0 %v1685
    %2585 = vmatpush.bf16.msra.mxu0 %v1681
    %2586 = vmatpush.bf16.msra.mxu0 %v1677
    %2587 = vmatpush.bf16.msra.mxu0 %v1673
    %2588 = vmatpush.bf16.msra.mxu0 %v1669
    %2589 = vmatmul.bf16.gmra.mxu0 %v463
    %v2590 = vpop.f32.mrf.mxu0
    %v2591 = vadd.f32 %v2578, %v2590
    %v2592 = vpop.f32.mrf.mxu0
    %2593 = vdwg.mxu0
    %2594 = vmatpush.bf16.msra.mxu0 %v1729
    %2595 = vmatpush.bf16.msra.mxu0 %v1725
    %2596 = vmatpush.bf16.msra.mxu0 %v1721
    %2597 = vmatpush.bf16.msra.mxu0 %v1717
    %2598 = vmatpush.bf16.msra.mxu0 %v1713
    %2599 = vmatpush.bf16.msra.mxu0 %v1709
    %2600 = vmatpush.bf16.msra.mxu0 %v1705
    %2601 = vmatpush.bf16.msra.mxu0 %v1701
    %2602 = vmatmul.bf16.gmra.mxu0 %v464
    %v2603 = vpop.f32.mrf.mxu0
    %v2604 = vadd.f32 %v2591, %v2603
    %v2605 = vpop.f32.mrf.mxu0
    %2606 = vdwg.mxu0
    %2607 = vmatpush.bf16.msra.mxu0 %v1761
    %2608 = vmatpush.bf16.msra.mxu0 %v1757
    %2609 = vmatpush.bf16.msra.mxu0 %v1753
    %2610 = vmatpush.bf16.msra.mxu0 %v1749
    %2611 = vmatpush.bf16.msra.mxu0 %v1745
    %2612 = vmatpush.bf16.msra.mxu0 %v1741
    %2613 = vmatpush.bf16.msra.mxu0 %v1737
    %2614 = vmatpush.bf16.msra.mxu0 %v1733
    %2615 = vmatmul.bf16.gmra.mxu0 %v465
    %v2616 = vpop.f32.mrf.mxu0
    %v2617 = vadd.f32 %v2604, %v2616
    %v2618 = vpop.f32.mrf.mxu0
    %2619 = vdwg.mxu0
    %2620 = vmatpush.bf16.msra.mxu0 %v1793
    %2621 = vmatpush.bf16.msra.mxu0 %v1789
    %2622 = vmatpush.bf16.msra.mxu0 %v1785
    %2623 = vmatpush.bf16.msra.mxu0 %v1781
    %2624 = vmatpush.bf16.msra.mxu0 %v1777
    %2625 = vmatpush.bf16.msra.mxu0 %v1773
    %2626 = vmatpush.bf16.msra.mxu0 %v1769
    %2627 = vmatpush.bf16.msra.mxu0 %v1765
    %2628 = vmatmul.bf16.gmra.mxu0 %v466
    %v2629 = vpop.f32.mrf.mxu0
    %v2630 = vadd.f32 %v2617, %v2629
    %v2631 = vpop.f32.mrf.mxu0
    %2632 = vdwg.mxu0
    %2633 = vmatpush.bf16.msra.mxu0 %v1825
    %2634 = vmatpush.bf16.msra.mxu0 %v1821
    %2635 = vmatpush.bf16.msra.mxu0 %v1817
    %2636 = vmatpush.bf16.msra.mxu0 %v1813
    %2637 = vmatpush.bf16.msra.mxu0 %v1809
    %2638 = vmatpush.bf16.msra.mxu0 %v1805
    %2639 = vmatpush.bf16.msra.mxu0 %v1801
    %2640 = vmatpush.bf16.msra.mxu0 %v1797
    %2641 = vmatmul.bf16.gmra.mxu0 %v469
    %v2642 = vpop.f32.mrf.mxu0
    %v2643 = vadd.f32 %v2630, %v2642
    %v2644 = vpop.f32.mrf.mxu0
    %2645 = vdwg.mxu0
    %2646 = vmatpush.bf16.msra.mxu0 %v1857
    %2647 = vmatpush.bf16.msra.mxu0 %v1853
    %2648 = vmatpush.bf16.msra.mxu0 %v1849
    %2649 = vmatpush.bf16.msra.mxu0 %v1845
    %2650 = vmatpush.bf16.msra.mxu0 %v1841
    %2651 = vmatpush.bf16.msra.mxu0 %v1837
    %2652 = vmatpush.bf16.msra.mxu0 %v1833
    %2653 = vmatpush.bf16.msra.mxu0 %v1829
    %2654 = vmatmul.bf16.gmra.mxu0 %v470
    %v2655 = vpop.f32.mrf.mxu0
    %v2656 = vadd.f32 %v2643, %v2655
    %v2657 = vpop.f32.mrf.mxu0
    %2658 = vdwg.mxu0
    %2659 = vmatpush.bf16.msra.mxu0 %v1889
    %2660 = vmatpush.bf16.msra.mxu0 %v1885
    %2661 = vmatpush.bf16.msra.mxu0 %v1881
    %2662 = vmatpush.bf16.msra.mxu0 %v1877
    %2663 = vmatpush.bf16.msra.mxu0 %v1873
    %2664 = vmatpush.bf16.msra.mxu0 %v1869
    %2665 = vmatpush.bf16.msra.mxu0 %v1865
    %2666 = vmatpush.bf16.msra.mxu0 %v1861
    %2667 = vmatmul.bf16.gmra.mxu0 %v471
    %v2668 = vpop.f32.mrf.mxu0
    %v2669 = vadd.f32 %v2656, %v2668
    %v2670 = vpop.f32.mrf.mxu0
    %2671 = vdwg.mxu0
    %2672 = vmatpush.bf16.msra.mxu0 %v1570
    %2673 = vmatpush.bf16.msra.mxu0 %v1566
    %2674 = vmatpush.bf16.msra.mxu0 %v1562
    %2675 = vmatpush.bf16.msra.mxu0 %v1558
    %2676 = vmatpush.bf16.msra.mxu0 %v1554
    %2677 = vmatpush.bf16.msra.mxu0 %v1550
    %2678 = vmatpush.bf16.msra.mxu0 %v1546
    %2679 = vmatpush.bf16.msra.mxu0 %v1542
    %2680 = vmatmul.bf16.gmra.mxu0 %v459
    %v2681 = vpop.f32.mrf.mxu0
    %v2682 = vadd.f32 %v452, %v2681
    %v2683 = vpop.f32.mrf.mxu0
    %2684 = vdwg.mxu0
    %2685 = vmatpush.bf16.msra.mxu0 %v1602
    %2686 = vmatpush.bf16.msra.mxu0 %v1598
    %2687 = vmatpush.bf16.msra.mxu0 %v1594
    %2688 = vmatpush.bf16.msra.mxu0 %v1590
    %2689 = vmatpush.bf16.msra.mxu0 %v1586
    %2690 = vmatpush.bf16.msra.mxu0 %v1582
    %2691 = vmatpush.bf16.msra.mxu0 %v1578
    %2692 = vmatpush.bf16.msra.mxu0 %v1574
    %2693 = vmatmul.bf16.gmra.mxu0 %v460
    %v2694 = vpop.f32.mrf.mxu0
    %v2695 = vadd.f32 %v2682, %v2694
    %v2696 = vpop.f32.mrf.mxu0
    %2697 = vdwg.mxu0
    %2698 = vmatpush.bf16.msra.mxu0 %v1634
    %2699 = vmatpush.bf16.msra.mxu0 %v1630
    %2700 = vmatpush.bf16.msra.mxu0 %v1626
    %2701 = vmatpush.bf16.msra.mxu0 %v1622
    %2702 = vmatpush.bf16.msra.mxu0 %v1618
    %2703 = vmatpush.bf16.msra.mxu0 %v1614
    %2704 = vmatpush.bf16.msra.mxu0 %v1610
    %2705 = vmatpush.bf16.msra.mxu0 %v1606
    %2706 = vmatmul.bf16.gmra.mxu0 %v461
    %v2707 = vpop.f32.mrf.mxu0
    %v2708 = vadd.f32 %v2695, %v2707
    %v2709 = vpop.f32.mrf.mxu0
    %2710 = vdwg.mxu0
    %2711 = vmatpush.bf16.msra.mxu0 %v1666
    %2712 = vmatpush.bf16.msra.mxu0 %v1662
    %2713 = vmatpush.bf16.msra.mxu0 %v1658
    %2714 = vmatpush.bf16.msra.mxu0 %v1654
    %2715 = vmatpush.bf16.msra.mxu0 %v1650
    %2716 = vmatpush.bf16.msra.mxu0 %v1646
    %2717 = vmatpush.bf16.msra.mxu0 %v1642
    %2718 = vmatpush.bf16.msra.mxu0 %v1638
    %2719 = vmatmul.bf16.gmra.mxu0 %v462
    %v2720 = vpop.f32.mrf.mxu0
    %v2721 = vadd.f32 %v2708, %v2720
    %v2722 = vpop.f32.mrf.mxu0
    %2723 = vdwg.mxu0
    %2724 = vmatpush.bf16.msra.mxu0 %v1698
    %2725 = vmatpush.bf16.msra.mxu0 %v1694
    %2726 = vmatpush.bf16.msra.mxu0 %v1690
    %2727 = vmatpush.bf16.msra.mxu0 %v1686
    %2728 = vmatpush.bf16.msra.mxu0 %v1682
    %2729 = vmatpush.bf16.msra.mxu0 %v1678
    %2730 = vmatpush.bf16.msra.mxu0 %v1674
    %2731 = vmatpush.bf16.msra.mxu0 %v1670
    %2732 = vmatmul.bf16.gmra.mxu0 %v463
    %v2733 = vpop.f32.mrf.mxu0
    %v2734 = vadd.f32 %v2721, %v2733
    %v2735 = vpop.f32.mrf.mxu0
    %2736 = vdwg.mxu0
    %2737 = vmatpush.bf16.msra.mxu0 %v1730
    %2738 = vmatpush.bf16.msra.mxu0 %v1726
    %2739 = vmatpush.bf16.msra.mxu0 %v1722
    %2740 = vmatpush.bf16.msra.mxu0 %v1718
    %2741 = vmatpush.bf16.msra.mxu0 %v1714
    %2742 = vmatpush.bf16.msra.mxu0 %v1710
    %2743 = vmatpush.bf16.msra.mxu0 %v1706
    %2744 = vmatpush.bf16.msra.mxu0 %v1702
    %2745 = vmatmul.bf16.gmra.mxu0 %v464
    %v2746 = vpop.f32.mrf.mxu0
    %v2747 = vadd.f32 %v2734, %v2746
    %v2748 = vpop.f32.mrf.mxu0
    %2749 = vdwg.mxu0
    %2750 = vmatpush.bf16.msra.mxu0 %v1762
    %2751 = vmatpush.bf16.msra.mxu0 %v1758
    %2752 = vmatpush.bf16.msra.mxu0 %v1754
    %2753 = vmatpush.bf16.msra.mxu0 %v1750
    %2754 = vmatpush.bf16.msra.mxu0 %v1746
    %2755 = vmatpush.bf16.msra.mxu0 %v1742
    %2756 = vmatpush.bf16.msra.mxu0 %v1738
    %2757 = vmatpush.bf16.msra.mxu0 %v1734
    %2758 = vmatmul.bf16.gmra.mxu0 %v465
    %v2759 = vpop.f32.mrf.mxu0
    %v2760 = vadd.f32 %v2747, %v2759
    %v2761 = vpop.f32.mrf.mxu0
    %2762 = vdwg.mxu0
    %2763 = vmatpush.bf16.msra.mxu0 %v1794
    %2764 = vmatpush.bf16.msra.mxu0 %v1790
    %2765 = vmatpush.bf16.msra.mxu0 %v1786
    %2766 = vmatpush.bf16.msra.mxu0 %v1782
    %2767 = vmatpush.bf16.msra.mxu0 %v1778
    %2768 = vmatpush.bf16.msra.mxu0 %v1774
    %2769 = vmatpush.bf16.msra.mxu0 %v1770
    %2770 = vmatpush.bf16.msra.mxu0 %v1766
    %2771 = vmatmul.bf16.gmra.mxu0 %v466
    %v2772 = vpop.f32.mrf.mxu0
    %v2773 = vadd.f32 %v2760, %v2772
    %v2774 = vpop.f32.mrf.mxu0
    %2775 = vdwg.mxu0
    %2776 = vmatpush.bf16.msra.mxu0 %v1826
    %2777 = vmatpush.bf16.msra.mxu0 %v1822
    %2778 = vmatpush.bf16.msra.mxu0 %v1818
    %2779 = vmatpush.bf16.msra.mxu0 %v1814
    %2780 = vmatpush.bf16.msra.mxu0 %v1810
    %2781 = vmatpush.bf16.msra.mxu0 %v1806
    %2782 = vmatpush.bf16.msra.mxu0 %v1802
    %2783 = vmatpush.bf16.msra.mxu0 %v1798
    %2784 = vmatmul.bf16.gmra.mxu0 %v469
    %v2785 = vpop.f32.mrf.mxu0
    %v2786 = vadd.f32 %v2773, %v2785
    %v2787 = vpop.f32.mrf.mxu0
    %2788 = vdwg.mxu0
    %2789 = vmatpush.bf16.msra.mxu0 %v1858
    %2790 = vmatpush.bf16.msra.mxu0 %v1854
    %2791 = vmatpush.bf16.msra.mxu0 %v1850
    %2792 = vmatpush.bf16.msra.mxu0 %v1846
    %2793 = vmatpush.bf16.msra.mxu0 %v1842
    %2794 = vmatpush.bf16.msra.mxu0 %v1838
    %2795 = vmatpush.bf16.msra.mxu0 %v1834
    %2796 = vmatpush.bf16.msra.mxu0 %v1830
    %2797 = vmatmul.bf16.gmra.mxu0 %v470
    %v2798 = vpop.f32.mrf.mxu0
    %v2799 = vadd.f32 %v2786, %v2798
    %v2800 = vpop.f32.mrf.mxu0
    %2801 = vdwg.mxu0
    %2802 = vmatpush.bf16.msra.mxu0 %v1890
    %2803 = vmatpush.bf16.msra.mxu0 %v1886
    %2804 = vmatpush.bf16.msra.mxu0 %v1882
    %2805 = vmatpush.bf16.msra.mxu0 %v1878
    %2806 = vmatpush.bf16.msra.mxu0 %v1874
    %2807 = vmatpush.bf16.msra.mxu0 %v1870
    %2808 = vmatpush.bf16.msra.mxu0 %v1866
    %2809 = vmatpush.bf16.msra.mxu0 %v1862
    %2810 = vmatmul.bf16.gmra.mxu0 %v471
    %v2811 = vpop.f32.mrf.mxu0
    %v2812 = vadd.f32 %v2799, %v2811
    %v2813 = vpop.f32.mrf.mxu0
    %2814 = vdwg.mxu0
    %v2815 = vmax.f32 %v2383, 0.0
    %v2816 = vmax.f32 %v2526, 0.0
    %v2817 = vmax.f32 %v2669, 0.0
    %v2818 = vmax.f32 %v2812, 0.0
    %v2819 = vpack.c.bf16 %v2815, %v2815
    %v2820 = vpack.c.bf16 %v2816, %v2816
    %v2821 = vpack.c.bf16 %v2817, %v2817
    %v2822 = vpack.c.bf16 %v2818, %v2818
    %v2823 = vld [vmem:[#allocation8] sm:$0xf]
    %v2824 = vld [vmem:[#allocation8 + $0x4] sm:$0xf]
    %v2825 = vld [vmem:[#allocation8 + $0x8] sm:$0xf]
    %v2826 = vld [vmem:[#allocation8 + $0xc] sm:$0xf]
    %v2827 = vld [vmem:[#allocation8 + $0x10] sm:$0xf]
    %v2828 = vld [vmem:[#allocation8 + $0x14] sm:$0xf]
    %v2829 = vld [vmem:[#allocation8 + $0x18] sm:$0xf]
    %v2830 = vld [vmem:[#allocation8 + $0x1c] sm:$0xf]
    %v2831 = vld [vmem:[#allocation8 + $0x20] sm:$0xf]
    %v2832 = vld [vmem:[#allocation8 + $0x24] sm:$0xf]
    %v2833 = vld [vmem:[#allocation8 + $0x28] sm:$0xf]
    %v2834 = vld [vmem:[#allocation8 + $0x2c] sm:$0xf]
    %v2835 = vld [vmem:[#allocation8 + $0x30] sm:$0xf]
    %v2836 = vld [vmem:[#allocation8 + $0x34] sm:$0xf]
    %v2837 = vld [vmem:[#allocation8 + $0x38] sm:$0xf]
    %v2838 = vld [vmem:[#allocation8 + $0x3c] sm:$0xf]
    %v2839 = vld [vmem:[#allocation8 + $0x40] sm:$0xf]
    %v2840 = vld [vmem:[#allocation8 + $0x44] sm:$0xf]
    %v2841 = vld [vmem:[#allocation8 + $0x48] sm:$0xf]
    %v2842 = vld [vmem:[#allocation8 + $0x4c] sm:$0xf]
    %v2843 = vld [vmem:[#allocation8 + $0x50] sm:$0xf]
    %v2844 = vld [vmem:[#allocation8 + $0x54] sm:$0xf]
    %v2845 = vld [vmem:[#allocation8 + $0x58] sm:$0xf]
    %v2846 = vld [vmem:[#allocation8 + $0x5c] sm:$0xf]
    %v2847 = vld [vmem:[#allocation8 + $0x60] sm:$0xf]
    %v2848 = vld [vmem:[#allocation8 + $0x64] sm:$0xf]
    %v2849 = vld [vmem:[#allocation8 + $0x68] sm:$0xf]
    %v2850 = vld [vmem:[#allocation8 + $0x6c] sm:$0xf]
    %v2851 = vld [vmem:[#allocation8 + $0x70] sm:$0xf]
    %v2852 = vld [vmem:[#allocation8 + $0x74] sm:$0xf]
    %v2853 = vld [vmem:[#allocation8 + $0x78] sm:$0xf]
    %v2854 = vld [vmem:[#allocation8 + $0x7c] sm:$0xf]
    %v2855 = vld [vmem:[#allocation8 + $0x80] sm:$0xf]
    %v2856 = vld [vmem:[#allocation8 + $0x84] sm:$0xf]
    %v2857 = vld [vmem:[#allocation8 + $0x88] sm:$0xf]
    %v2858 = vld [vmem:[#allocation8 + $0x8c] sm:$0xf]
    %v2859 = vld [vmem:[#allocation8 + $0x90] sm:$0xf]
    %v2860 = vld [vmem:[#allocation8 + $0x94] sm:$0xf]
    %v2861 = vld [vmem:[#allocation8 + $0x98] sm:$0xf]
    %v2862 = vld [vmem:[#allocation8 + $0x9c] sm:$0xf]
    %v2863 = vld [vmem:[#allocation8 + $0xa0] sm:$0xf]
    %v2864 = vld [vmem:[#allocation8 + $0xa4] sm:$0xf]
    %v2865 = vld [vmem:[#allocation8 + $0xa8] sm:$0xf]
    %v2866 = vld [vmem:[#allocation8 + $0xac] sm:$0xf]
    %v2867 = vld [vmem:[#allocation8 + $0xb0] sm:$0xf]
    %v2868 = vld [vmem:[#allocation8 + $0xb4] sm:$0xf]
    %v2869 = vld [vmem:[#allocation8 + $0xb8] sm:$0xf]
    %v2870 = vld [vmem:[#allocation8 + $0xbc] sm:$0xf]
    %v2871 = vld [vmem:[#allocation8 + $0xc0] sm:$0xf]
    %v2872 = vld [vmem:[#allocation8 + $0xc4] sm:$0xf]
    %v2873 = vld [vmem:[#allocation8 + $0xc8] sm:$0xf]
    %v2874 = vld [vmem:[#allocation8 + $0xcc] sm:$0xf]
    %v2875 = vld [vmem:[#allocation8 + $0xd0] sm:$0xf]
    %v2876 = vld [vmem:[#allocation8 + $0xd4] sm:$0xf]
    %v2877 = vld [vmem:[#allocation8 + $0xd8] sm:$0xf]
    %v2878 = vld [vmem:[#allocation8 + $0xdc] sm:$0xf]
    %v2879 = vld [vmem:[#allocation8 + $0xe0] sm:$0xf]
    %v2880 = vld [vmem:[#allocation8 + $0xe4] sm:$0xf]
    %v2881 = vld [vmem:[#allocation8 + $0xe8] sm:$0xf]
    %v2882 = vld [vmem:[#allocation8 + $0xec] sm:$0xf]
    %v2883 = vld [vmem:[#allocation8 + $0xf0] sm:$0xf]
    %v2884 = vld [vmem:[#allocation8 + $0xf4] sm:$0xf]
    %v2885 = vld [vmem:[#allocation8 + $0xf8] sm:$0xf]
    %v2886 = vld [vmem:[#allocation8 + $0xfc] sm:$0xf]
    %v2887 = vld [vmem:[#allocation10] sm:$0x1]
    %v2889 = vperm.slane %v2887, 0
    %v2955 = vunpack.c.l.b16 %v2823
    %v2956 = vunpack.c.l.b16 %v2824
    %v2957 = vunpack.c.l.b16 %v2825
    %v2958 = vunpack.c.l.b16 %v2826
    %v2959 = vunpack.c.l.b16 %v2827
    %v2960 = vunpack.c.l.b16 %v2828
    %v2961 = vunpack.c.l.b16 %v2829
    %v2962 = vunpack.c.l.b16 %v2830
    %v2963 = vunpack.c.l.b16 %v2831
    %v2964 = vunpack.c.l.b16 %v2832
    %v2965 = vunpack.c.l.b16 %v2833
    %v2966 = vunpack.c.l.b16 %v2834
    %v2967 = vunpack.c.l.b16 %v2835
    %v2968 = vunpack.c.l.b16 %v2836
    %v2969 = vunpack.c.l.b16 %v2837
    %v2970 = vunpack.c.l.b16 %v2838
    %v2971 = vunpack.c.l.b16 %v2839
    %v2972 = vunpack.c.l.b16 %v2840
    %v2973 = vunpack.c.l.b16 %v2841
    %v2974 = vunpack.c.l.b16 %v2842
    %v2975 = vunpack.c.l.b16 %v2843
    %v2976 = vunpack.c.l.b16 %v2844
    %v2977 = vunpack.c.l.b16 %v2845
    %v2978 = vunpack.c.l.b16 %v2846
    %v2979 = vunpack.c.l.b16 %v2847
    %v2980 = vunpack.c.l.b16 %v2848
    %v2981 = vunpack.c.l.b16 %v2849
    %v2982 = vunpack.c.l.b16 %v2850
    %v2983 = vunpack.c.l.b16 %v2851
    %v2984 = vunpack.c.l.b16 %v2852
    %v2985 = vunpack.c.l.b16 %v2853
    %v2986 = vunpack.c.l.b16 %v2854
    %v2987 = vunpack.c.l.b16 %v2855
    %v2988 = vunpack.c.l.b16 %v2856
    %v2989 = vunpack.c.l.b16 %v2857
    %v2990 = vunpack.c.l.b16 %v2858
    %v2991 = vunpack.c.l.b16 %v2859
    %v2992 = vunpack.c.l.b16 %v2860
    %v2993 = vunpack.c.l.b16 %v2861
    %v2994 = vunpack.c.l.b16 %v2862
    %v2995 = vunpack.c.l.b16 %v2863
    %v2996 = vunpack.c.l.b16 %v2864
    %v2997 = vunpack.c.l.b16 %v2865
    %v2998 = vunpack.c.l.b16 %v2866
    %v2999 = vunpack.c.l.b16 %v2867
    %v3000 = vunpack.c.l.b16 %v2868
    %v3001 = vunpack.c.l.b16 %v2869
    %v3002 = vunpack.c.l.b16 %v2870
    %v3003 = vunpack.c.l.b16 %v2871
    %v3004 = vunpack.c.l.b16 %v2872
    %v3005 = vunpack.c.l.b16 %v2873
    %v3006 = vunpack.c.l.b16 %v2874
    %v3007 = vunpack.c.l.b16 %v2875
    %v3008 = vunpack.c.l.b16 %v2876
    %v3009 = vunpack.c.l.b16 %v2877
    %v3010 = vunpack.c.l.b16 %v2878
    %v3011 = vunpack.c.l.b16 %v2879
    %v3012 = vunpack.c.l.b16 %v2880
    %v3013 = vunpack.c.l.b16 %v2881
    %v3014 = vunpack.c.l.b16 %v2882
    %v3015 = vunpack.c.l.b16 %v2883
    %v3016 = vunpack.c.l.b16 %v2884
    %v3017 = vunpack.c.l.b16 %v2885
    %v3018 = vunpack.c.l.b16 %v2886
    %v3019 = vpack.c.b16 %v2956, %v2955
    %v3020 = vpack.c.b16 %v2958, %v2957
    %v3021 = vpack.c.b16 %v2960, %v2959
    %v3022 = vpack.c.b16 %v2962, %v2961
    %v3023 = vpack.c.b16 %v2964, %v2963
    %v3024 = vpack.c.b16 %v2966, %v2965
    %v3025 = vpack.c.b16 %v2968, %v2967
    %v3026 = vpack.c.b16 %v2970, %v2969
    %v3027 = vpack.c.b16 %v2972, %v2971
    %v3028 = vpack.c.b16 %v2974, %v2973
    %v3029 = vpack.c.b16 %v2976, %v2975
    %v3030 = vpack.c.b16 %v2978, %v2977
    %v3031 = vpack.c.b16 %v2980, %v2979
    %v3032 = vpack.c.b16 %v2982, %v2981
    %v3033 = vpack.c.b16 %v2984, %v2983
    %v3034 = vpack.c.b16 %v2986, %v2985
    %v3035 = vpack.c.b16 %v2988, %v2987
    %v3036 = vpack.c.b16 %v2990, %v2989
    %v3037 = vpack.c.b16 %v2992, %v2991
    %v3038 = vpack.c.b16 %v2994, %v2993
    %v3039 = vpack.c.b16 %v2996, %v2995
    %v3040 = vpack.c.b16 %v2998, %v2997
    %v3041 = vpack.c.b16 %v3000, %v2999
    %v3042 = vpack.c.b16 %v3002, %v3001
    %v3043 = vpack.c.b16 %v3004, %v3003
    %v3044 = vpack.c.b16 %v3006, %v3005
    %v3045 = vpack.c.b16 %v3008, %v3007
    %v3046 = vpack.c.b16 %v3010, %v3009
    %v3047 = vpack.c.b16 %v3012, %v3011
    %v3048 = vpack.c.b16 %v3014, %v3013
    %v3049 = vpack.c.b16 %v3016, %v3015
    %v3050 = vpack.c.b16 %v3018, %v3017
    %3083 = vmatpush.bf16.msra.mxu0 %v3026
    %3084 = vmatpush.bf16.msra.mxu0 %v3025
    %3085 = vmatpush.bf16.msra.mxu0 %v3024
    %3086 = vmatpush.bf16.msra.mxu0 %v3023
    %3087 = vmatpush.bf16.msra.mxu0 %v3022
    %3088 = vmatpush.bf16.msra.mxu0 %v3021
    %3089 = vmatpush.bf16.msra.mxu0 %v3020
    %3090 = vmatpush.bf16.msra.mxu0 %v3019
    %3091 = vmatmul.bf16.gmra.mxu0 %v2819
    %v3092 = vpop.f32.mrf.mxu0
    %v3093 = vadd.f32 %v2889, %v3092
    %v3094 = vpop.f32.mrf.mxu0
    %3095 = vdwg.mxu0
    %3096 = vmatpush.bf16.msra.mxu0 %v3034
    %3097 = vmatpush.bf16.msra.mxu0 %v3033
    %3098 = vmatpush.bf16.msra.mxu0 %v3032
    %3099 = vmatpush.bf16.msra.mxu0 %v3031
    %3100 = vmatpush.bf16.msra.mxu0 %v3030
    %3101 = vmatpush.bf16.msra.mxu0 %v3029
    %3102 = vmatpush.bf16.msra.mxu0 %v3028
    %3103 = vmatpush.bf16.msra.mxu0 %v3027
    %3104 = vmatmul.bf16.gmra.mxu0 %v2820
    %v3105 = vpop.f32.mrf.mxu0
    %v3106 = vadd.f32 %v3093, %v3105
    %v3107 = vpop.f32.mrf.mxu0
    %3108 = vdwg.mxu0
    %3109 = vmatpush.bf16.msra.mxu0 %v3042
    %3110 = vmatpush.bf16.msra.mxu0 %v3041
    %3111 = vmatpush.bf16.msra.mxu0 %v3040
    %3112 = vmatpush.bf16.msra.mxu0 %v3039
    %3113 = vmatpush.bf16.msra.mxu0 %v3038
    %3114 = vmatpush.bf16.msra.mxu0 %v3037
    %3115 = vmatpush.bf16.msra.mxu0 %v3036
    %3116 = vmatpush.bf16.msra.mxu0 %v3035
    %3117 = vmatmul.bf16.gmra.mxu0 %v2821
    %v3118 = vpop.f32.mrf.mxu0
    %v3119 = vadd.f32 %v3106, %v3118
    %v3120 = vpop.f32.mrf.mxu0
    %3121 = vdwg.mxu0
    %3122 = vmatpush.bf16.msra.mxu0 %v3050
    %3123 = vmatpush.bf16.msra.mxu0 %v3049
    %3124 = vmatpush.bf16.msra.mxu0 %v3048
    %3125 = vmatpush.bf16.msra.mxu0 %v3047
    %3126 = vmatpush.bf16.msra.mxu0 %v3046
    %3127 = vmatpush.bf16.msra.mxu0 %v3045
    %3128 = vmatpush.bf16.msra.mxu0 %v3044
    %3129 = vmatpush.bf16.msra.mxu0 %v3043
    %3130 = vmatmul.bf16.gmra.mxu0 %v2822
    %v3131 = vpop.f32.mrf.mxu0
    %v3132 = vadd.f32 %v3119, %v3131
    %v3133 = vpop.f32.mrf.mxu0
    %3134 = vdwg.mxu0
    %3135 = vst [vmem:[#allocation11] sm:$0x3] %v3132
    // Predicated region
    $region42: #{tpu_custom_call.1} parent=1 // pred_check
      _
    $region43: #{tpu_custom_call.1} parent=1 // pred_check_branch
      %3137 = sbr.rel (0) target = $region45
    $region44: #{tpu_custom_call.1} parent=1 // pred_region
      %3139 = vsyncadd [#allocation4], 0
      %s3141 = sshll.u32 [#allocation11], 4
      %s3142 = int_to_ptr.vmem [resolvable:$true] %s3141
      %s3143 = sshll.u32 %s5, 4
      %s3144 = int_to_ptr.hbm [resolvable:$true] %s3143
      %3146 = dma.vmem_to_hbm [thread:$0]  %s3142, 32, %s3144, [#allocation4]
    $region45: #{tpu_custom_call.1} parent=1 // pred_fallthru
      _
    // Predicated region
    $region46: #{tpu_custom_call.1} parent=1 // pred_check
      _
    $region47: #{tpu_custom_call.1} parent=1 // pred_check_branch
      %3148 = sbr.rel (0) target = $region49
    $region48: #{tpu_custom_call.1} parent=1 // pred_region
      %3150 = dma.done [#allocation4], 32
    $region49: #{tpu_custom_call.1} parent=1 // pred_fallthru
      _
    %3151 = vsyncpa [#allocation3], 1
    %3152 = vsyncpa [#allocation6], 1
    %3153 = vsyncpa [#allocation9], 1
    %3154 = vsyncpa [#allocation4], 1

</llo_original>
